<compile_context>
chip_gen: v6e
topology: v6e:2x2x1
jax: 0.10.0
libtpu: 0.0.40
codegen_flags: <defaults>
</compile_context>

<pallas_src>
import functools
import math

import jax
import jax.numpy as jnp
from jax.experimental import pallas as pl
from jax.experimental.pallas import tpu as pltpu

_LANE = 128
_MIN_SPLIT_FRAMES = 1024   # below this, a single grid block is fine


def _round_up(x, m):
    return ((x + m - 1) // m) * m


def _round_down(x, m):
    return (x // m) * m


def _vmem_capacity_bytes():
    try:
        return int(pltpu.get_tpu_info().vmem_capacity_bytes)
    except Exception:
        return 64 << 20            # conservative fallback (v7x-sized VMEM)


def _working_set_bytes(tile, num_inputs, num_channels, itemsize):
    """Double-buffered per-step VMEM footprint, including lane padding of the
    channel dim and of the (tile, num_inputs) f32 weight tile (1..I -> 128)."""
    padded_c = _round_up(num_channels, _LANE)
    inputs_b = num_inputs * tile * padded_c * itemsize
    output_b = tile * padded_c * itemsize
    weight_b = tile * _LANE * 4
    return 2 * (inputs_b + output_b + weight_b)


def _pick_frame_tile(requested, num_frames, num_inputs, num_channels, itemsize):
    """Pick the largest frame tile whose double-buffered working set fits the
    generation-aware VMEM budget, keeping >= 2 grid steps for non-trivial F."""
    padded_c = _round_up(num_channels, _LANE)
    # Per-frame double-buffered bytes: inputs + output + lane-padded f32 weights.
    bytes_per_frame = 2 * ((num_inputs + 1) * padded_c * itemsize + _LANE * 4)

    capacity = _vmem_capacity_bytes()
    budget = max(16 << 20, int(0.4 * capacity))   # ~25 MiB v7x, ~51 MiB v5e/v6e

    align = 16 if itemsize < 4 else 8
    tile = max(align, _round_down(budget // bytes_per_frame, align))
    if requested is not None:
        tile = min(tile, max(align, _round_down(requested, align)))

    if num_frames >= _MIN_SPLIT_FRAMES:
        # Never collapse to a single grid block: >= 2 steps enable DMA overlap
        # and dual-TensorCore sharding of the frame axis on v7x.
        tile = min(tile, _round_up(pl.cdiv(num_frames, 2), align))

    if tile >= num_frames:
        return num_frames
    return tile


# ---------------------------------------------------------------------------
# Pallas kernel: out[f, c] = sum_i w[f, i] * x_i[f, c]
# ---------------------------------------------------------------------------
def _combine_kernel(*refs, num_inputs):
    x_refs = refs[:num_inputs]            # each: (tile, C) input tile
    w_ref = refs[num_inputs]              # (tile, num_inputs) float32
    o_ref = refs[num_inputs + 1]          # (tile, C) output tile

    w = w_ref[...]                        # one contiguous weight-tile load
    acc = x_refs[0][...].astype(jnp.float32) * w[:, 0:1]
    for i in range(1, num_inputs):        # small static unroll over layers
        acc = acc + x_refs[i][...].astype(jnp.float32) * w[:, i:i + 1]
    o_ref[...] = acc.astype(o_ref.dtype)


def random_combine_apply(inputs, weights, *, frame_tile=None):
    """Weighted combination of `inputs` (list of same-shape (*, C) arrays)
    using per-frame weights of shape (num_frames, num_inputs), float32."""
    num_inputs = len(inputs)
    orig_shape = inputs[0].shape
    num_channels = orig_shape[-1]
    num_frames = inputs[0].size // num_channels
    dtype = inputs[0].dtype
    itemsize = jnp.dtype(dtype).itemsize

    tile = _pick_frame_tile(frame_tile, num_frames, num_inputs,
                            num_channels, itemsize)
    grid = (pl.cdiv(num_frames, tile),)    # trailing partial block is masked

    # Flat (F, C) views of each input (reshape only; no stacked HBM copy).
    flats = [a.reshape(num_frames, num_channels) for a in inputs]
    # Weights stay in their natural (F, num_inputs) float32 layout (no copy).
    w = weights.astype(jnp.float32)

    working_set = _working_set_bytes(tile, num_inputs, num_channels, itemsize)
    capacity = _vmem_capacity_bytes()
    vmem_limit = int(min(int(0.8 * capacity),
                         max(32 << 20, working_set + (8 << 20))))

    in_specs = [pl.BlockSpec((tile, num_channels), lambda f: (f, 0))
                for _ in range(num_inputs)]
    in_specs.append(pl.BlockSpec((tile, num_inputs), lambda f: (f, 0)))

    out = pl.pallas_call(
        functools.partial(_combine_kernel, num_inputs=num_inputs),
        out_shape=jax.ShapeDtypeStruct((num_frames, num_channels), dtype),
        grid=grid,
        in_specs=in_specs,
        out_specs=pl.BlockSpec((tile, num_channels), lambda f: (f, 0)),
        compiler_params=pltpu.CompilerParams(
            dimension_semantics=("parallel",),
            vmem_limit_bytes=vmem_limit),
    )(*flats, w)
    return out.reshape(orig_shape)


# ---------------------------------------------------------------------------
# Random weight generation (mirrors _get_random_weights) — JAX glue, seeded.
# Produces weights directly in the (F, num_inputs) kernel layout.
# ---------------------------------------------------------------------------
def get_random_weights(key, num_frames, num_inputs, *, final_weight=0.5,
                       pure_prob=0.5, stddev=2.0, dtype=jnp.float32):
    k_nonfinal, k_choose, k_logp, k_blend = jax.random.split(key, 4)

    # Pure (one-hot) weights.
    final = jnp.full((num_frames,), num_inputs - 1, dtype=jnp.int32)
    nonfinal = jax.random.randint(k_nonfinal, (num_frames,), 0, num_inputs - 1)
    indexes = jnp.where(
        jax.random.uniform(k_choose, (num_frames,)) < final_weight, final, nonfinal)
    pure = jax.nn.one_hot(indexes, num_inputs, dtype=dtype)

    # Mixed (softmax of noisy log-weights).
    final_log_weight = math.log(final_weight / (1.0 - final_weight) * (num_inputs - 1))
    logprobs = jax.random.normal(k_logp, (num_frames, num_inputs), dtype=dtype) * stddev
    logprobs = logprobs.at[:, -1].add(final_log_weight)
    mixed = jax.nn.softmax(logprobs, axis=1)

    if pure_prob == 0.0:
        return mixed
    if pure_prob == 1.0:
        return pure
    blend = jax.random.uniform(k_blend, (num_frames, 1)) < pure_prob
    return jnp.where(blend, pure, mixed)


def random_combine_forward(inputs, key, *, training=True, final_weight=0.5,
                           pure_prob=0.5, stddev=2.0, frame_tile=None):
    """Full RandomCombine.forward equivalent."""
    if not training:
        return inputs[-1]
    num_inputs = len(inputs)
    num_channels = inputs[0].shape[-1]
    num_frames = inputs[0].size // num_channels
    weights = get_random_weights(
        key, num_frames, num_inputs,
        final_weight=final_weight, pure_prob=pure_prob, stddev=stddev,
        dtype=jnp.float32)                         # keep weights float32 end-to-end
    return random_combine_apply(inputs, weights, frame_tile=frame_tile)


# ---------------------------------------------------------------------------
# RNNEncoder-style forward scaffold (stateless path).
# ---------------------------------------------------------------------------
def rnn_encoder_forward(src, layer_fns, aux_layers, key, *, training=True,
                        final_weight=0.5, pure_prob=0.333, stddev=2.0,
                        frame_tile=None):
    """Mirrors RNNEncoder.forward (states=None path): run layers in sequence,
    collect aux-layer outputs, combine with RandomCombine (Pallas kernel)."""
    # TODO(synk): RNNEncoderLayer (the LSTM layer) is not defined in the spec;
    # layers are taken as external JAX callables. Only the RandomCombine
    # combiner is implemented as a Pallas kernel here.
    num_layers = len(layer_fns)
    output = src
    if aux_layers is None:
        for fn in layer_fns:
            output = fn(output)
        return output
    assert num_layers - 1 not in aux_layers
    aux = set(aux_layers) | {num_layers - 1}
    outputs = []
    for i, fn in enumerate(layer_fns):
        output = fn(output)
        if i in aux:
            outputs.append(output)
    return random_combine_forward(outputs, key, training=training,
                                  final_weight=final_weight,
                                  pure_prob=pure_prob, stddev=stddev,
                                  frame_tile=frame_tile)


# ---------------------------------------------------------------------------
if __name__ == "__main__":
    key = jax.random.PRNGKey(0)
    num_inputs = 3           # e.g. outputs of aux layers + final layer
    k_in, k_w, k_w2, k_enc = jax.random.split(key, 4)

    def check_combine(S, N, C, frame_tile, k_weights):
        inputs = [
            jax.random.normal(jax.random.fold_in(k_in, i), (S, N, C),
                              dtype=jnp.float32)
            for i in range(num_inputs)
        ]
        out = random_combine_forward(
            inputs, k_weights, training=True,
            final_weight=0.5, pure_prob=0.333, stddev=2.0,
            frame_tile=frame_tile)
        out = jax.block_until_ready(out)

        # Reference: plain-JAX weighted sum with the same (deterministic) weights.
        F = S * N
        w_ref = get_random_weights(k_weights, F, num_inputs,
                                   final_weight=0.5, pure_prob=0.333, stddev=2.0,
                                   dtype=jnp.float32)
        stacked = jnp.stack([a.reshape(F, C) for a in inputs], axis=2)  # (F, C, I)
        ref = jnp.matmul(stacked, w_ref[:, :, None])[..., 0].reshape(S, N, C)
        assert out.shape == (S, N, C)
        assert jnp.allclose(out, ref, atol=1e-5, rtol=1e-5)
        return inputs

    # Case 1: F = 1024, auto tile -> grid split in two (>= 2 steps), lane-dense C.
    inputs = check_combine(S=64, N=16, C=128, frame_tile=None, k_weights=k_w)
    # Case 2: F = 976 NOT divisible by frame_tile -> exercises cdiv / masked tail.
    check_combine(S=61, N=16, C=128, frame_tile=384, k_weights=k_w2)

    # Eval mode: returns the last input untouched.
    out_eval = random_combine_forward(inputs, k_w, training=False)
    assert jnp.array_equal(out_eval, inputs[-1])

    # RNNEncoder-style smoke test with deterministic stand-in layer callables.
    S, N, C = 32, 8, 128
    src = jax.random.normal(k_enc, (S, N, C), dtype=jnp.float32)
    layer_fns = [(lambda s: (lambda x: jnp.tanh(x) + 0.01 * s))(i)
                 for i in range(6)]
    enc_out = rnn_encoder_forward(src, layer_fns, aux_layers=[1, 3], key=k_w,
                                  training=True)
    enc_out = jax.block_until_ready(enc_out)
    assert enc_out.shape == src.shape
    assert bool(jnp.all(jnp.isfinite(enc_out)))

    print("KERNEL_OK")
</pallas_src>

<mosaic_0001>
module attributes {stable_mosaic.version = 11 : i64} {
  func.func @_combine_kernel(%arg0: i32, %arg1: memref<512x128xf32, #tpu.memory_space<vmem>>, %arg2: memref<512x128xf32, #tpu.memory_space<vmem>>, %arg3: memref<512x128xf32, #tpu.memory_space<vmem>>, %arg4: memref<512x3xf32, #tpu.memory_space<vmem>>, %arg5: memref<512x128xf32, #tpu.memory_space<vmem>>) attributes {dimension_semantics = [#tpu.dimension_semantics<parallel>], iteration_bounds = array<i64: 2>, scalar_prefetch = 0 : i64, scratch_operands = 0 : i64, tpu.core_type = #tpu.core_type<tc>, window_params = [{transform_indices = @transform_0, window_bounds = array<i64: 512, 128>}, {transform_indices = @transform_1, window_bounds = array<i64: 512, 128>}, {transform_indices = @transform_2, window_bounds = array<i64: 512, 128>}, {transform_indices = @transform_3, window_bounds = array<i64: 512, 3>}, {transform_indices = @transform_4, window_bounds = array<i64: 512, 128>}]} {
    %c0 = arith.constant 0 : index
    %c0_0 = arith.constant 0 : index
    %0 = vector.load %arg4[%c0, %c0_0] : memref<512x3xf32, #tpu.memory_space<vmem>>, vector<512x3xf32>
    %c0_1 = arith.constant 0 : index
    %c0_2 = arith.constant 0 : index
    %1 = vector.load %arg1[%c0_1, %c0_2] : memref<512x128xf32, #tpu.memory_space<vmem>>, vector<512x128xf32>
    %2 = vector.extract_strided_slice %0 {offsets = [0, 0], sizes = [512, 1], strides = [1, 1]} : vector<512x3xf32> to vector<512x1xf32>
    %3 = vector.broadcast %2 : vector<512x1xf32> to vector<512x128xf32>
    %4 = arith.mulf %1, %3 : vector<512x128xf32>
    %c0_3 = arith.constant 0 : index
    %c0_4 = arith.constant 0 : index
    %5 = vector.load %arg2[%c0_3, %c0_4] : memref<512x128xf32, #tpu.memory_space<vmem>>, vector<512x128xf32>
    %6 = vector.extract_strided_slice %0 {offsets = [0, 1], sizes = [512, 1], strides = [1, 1]} : vector<512x3xf32> to vector<512x1xf32>
    %7 = vector.broadcast %6 : vector<512x1xf32> to vector<512x128xf32>
    %8 = arith.mulf %5, %7 : vector<512x128xf32>
    %9 = arith.addf %4, %8 : vector<512x128xf32>
    %c0_5 = arith.constant 0 : index
    %c0_6 = arith.constant 0 : index
    %10 = vector.load %arg3[%c0_5, %c0_6] : memref<512x128xf32, #tpu.memory_space<vmem>>, vector<512x128xf32>
    %11 = vector.extract_strided_slice %0 {offsets = [0, 2], sizes = [512, 1], strides = [1, 1]} : vector<512x3xf32> to vector<512x1xf32>
    %12 = vector.broadcast %11 : vector<512x1xf32> to vector<512x128xf32>
    %13 = arith.mulf %10, %12 : vector<512x128xf32>
    %14 = arith.addf %9, %13 : vector<512x128xf32>
    %c0_7 = arith.constant 0 : index
    %c0_8 = arith.constant 0 : index
    %15 = vector.load %arg5[%c0_7, %c0_8] : memref<512x128xf32, #tpu.memory_space<vmem>>, vector<512x128xf32>
    tpu.vector_store %arg5[%c0_7, %c0_8], %14 {strides = array<i32>} : memref<512x128xf32, #tpu.memory_space<vmem>>, vector<512x128xf32>,
    return
  }
  func.func @transform_0(%arg0: i32) -> (i32, i32) {
    %c0_i32 = arith.constant 0 : i32
    %c0_i32_0 = arith.constant 0 : i32
    return %arg0, %c0_i32 : i32, i32
  }
  func.func @transform_1(%arg0: i32) -> (i32, i32) {
    %c0_i32 = arith.constant 0 : i32
    %c0_i32_0 = arith.constant 0 : i32
    return %arg0, %c0_i32 : i32, i32
  }
  func.func @transform_2(%arg0: i32) -> (i32, i32) {
    %c0_i32 = arith.constant 0 : i32
    %c0_i32_0 = arith.constant 0 : i32
    return %arg0, %c0_i32 : i32, i32
  }
  func.func @transform_3(%arg0: i32) -> (i32, i32) {
    %c0_i32 = arith.constant 0 : i32
    %c0_i32_0 = arith.constant 0 : i32
    return %arg0, %c0_i32 : i32, i32
  }
  func.func @transform_4(%arg0: i32) -> (i32, i32) {
    %c0_i32 = arith.constant 0 : i32
    %c0_i32_0 = arith.constant 0 : i32
    return %arg0, %c0_i32 : i32, i32
  }
}

</mosaic_0001>

<llo_original>
// kernel: tpu_custom_call.1
$region0: #{tpu_custom_call.1}
  #allocation0 [shape = 'u32[]', space=smem, size = 0x4, offset = 0x4, fixed_abs, tag = 'smem constant byte address 0x4 - core index']
  #allocation1 [shape = 'u32[144,128]{1,0:T(1,128)}', space=vmem, size = 0x12000, scoped, tag = 'internal scratch']
  %s0 = inlined_call_operand.vmem [shape: f32[1024,128], index: 0, kind: input, shape index: {}]
  %s1 = inlined_call_operand.hbm [shape: f32[1024,128], index: 1, kind: input, shape index: {}]
  %s2 = inlined_call_operand.hbm [shape: f32[1024,128], index: 2, kind: input, shape index: {}]
  %s3 = inlined_call_operand.vmem [shape: f32[1024,3], index: 3, kind: input, shape index: {}]
  %s4 = inlined_call_operand.hbm [shape: f32[1024,128], index: 4, kind: output, shape index: {}]
  %s5 = sld [smem:[#allocation0]]
  $region57: #{tpu_custom_call.1} parent=0
    _
  %s7 = ssub.s32 1, %s5
  %s8 = scalar_select 0, %s7, %s5
  $region1: #{tpu_custom_call.1} parent=0
    #allocation2 [shape = 'u8[524288]{0}', space=vmem, size = 0x80000, scoped, tag = 'input window, operand 1']
    #allocation3 [shape = 's32[2]{0}', space=sflag, size = 0x8, scoped, tag = 'scoped memory for tpu_custom_call.1']
    #allocation4 [shape = 's32[2]{0}', space=sflag, size = 0x8, scoped, tag = 'scoped memory for tpu_custom_call.1']
    #allocation5 [shape = 'u8[524288]{0}', space=vmem, size = 0x80000, scoped, tag = 'input window, operand 2']
    #allocation6 [shape = 's32[2]{0}', space=sflag, size = 0x8, scoped, tag = 'scoped memory for tpu_custom_call.1']
    #allocation7 [shape = 'u8[524288]{0}', space=vmem, size = 0x80000, scoped, tag = 'output window, operand 0']
    %9 = vsyncpa [#allocation3], 0
    %s10 = scalar_lea.sflag [#allocation3], 1
    %11 = vsyncpa %s10, 0
    %12 = vsyncpa [#allocation6], 0
    %s13 = scalar_lea.sflag [#allocation6], 1
    %14 = vsyncpa %s13, 0
    %15 = vsyncpa [#allocation4], 0
    %s16 = scalar_lea.sflag [#allocation4], 1
    %17 = vsyncpa %s16, 0
    loop: start=0, step=1, limit=4
    $region2: #{tpu_custom_call.1} parent=1 // loop_pre_header
      _
    $region3: #{tpu_custom_call.1} parent=1 // loop_header
      %s19 = sphi 0, %s23
      %p20 = scmp.ge.s32.totalorder %s19, 4
      %s29 = sphi 0, %s31
      %s32 = sphi 0, %s29
      %s33 = sphi 0, %s32
      %s49 = sphi 0, %s33
      %s55 = sphi 0, %s57
      %s58 = sphi 0, %s55
      %s59 = sphi 0, %s58
      %s75 = sphi 0, %s59
      %s81 = sphi 0, %s83
      %s84 = sphi 0, %s81
      %s85 = sphi 0, %s84
      %s101 = sphi 0, %s85
      %s107 = sphi 0, %s109
      %s110 = sphi 0, %s107
      %s111 = sphi 0, %s110
      %s127 = sphi 0, %s111
      %s133 = sphi 0, %s135
      %s136 = sphi 0, %s133
      %s137 = sphi 0, %s136
      %s153 = sphi 0, %s137
    $region4: #{tpu_custom_call.1} parent=1 // loop_header_branch
      %22 = sbr.rel (%p20) target = $region8
    $region5: #{tpu_custom_call.1} parent=1 // loop_body
      %s24 = ssub.s32 %s19, 1
      %s25 = ssub.s32 %s19, 2
      %s26 = sadd.s32 %s19, 1
      %s27 = ssub.s32 %s19, %s26
      %p28 = scmp.eq.s32.totalorder %s27, 0
      %s30 = sadd.s32 %s29, 1
      %s31 = scalar_select %p28, %s29, %s30
      %p34 = pneg %p28
      %p35 = scmp.eq.s32.totalorder %s19, 1
      %p36 = por %p34, %p35
      %p37 = scmp.ne.s32.totalorder %s29, %s32
      %p38 = scmp.eq.s32.totalorder %s19, 0
      %p39 = por %p37, %p38
      %p40 = scmp.ne.s32.totalorder %s29, %s32
      %p41 = scmp.eq.s32.totalorder %s24, 1
      %p42 = por %p40, %p41
      %p43 = scmp.ne.s32.totalorder %s32, %s33
      %p44 = scmp.eq.s32.totalorder %s24, 0
      %p45 = por %p43, %p44
      %p46 = scmp.ne.s32.totalorder %s32, %s33
      %p47 = scmp.eq.s32.totalorder %s25, 1
      %p48 = por %p46, %p47
      %p50 = scmp.ne.s32.totalorder %s33, %s49
      %p51 = scmp.eq.s32.totalorder %s25, 0
      %p52 = por %p50, %p51
      %s53 = ssub.s32 %s19, %s26
      %p54 = scmp.eq.s32.totalorder %s53, 0
      %s56 = sadd.s32 %s55, 1
      %s57 = scalar_select %p54, %s55, %s56
      %p60 = pneg %p54
      %p61 = scmp.eq.s32.totalorder %s19, 1
      %p62 = por %p60, %p61
      %p63 = scmp.ne.s32.totalorder %s55, %s58
      %p64 = scmp.eq.s32.totalorder %s19, 0
      %p65 = por %p63, %p64
      %p66 = scmp.ne.s32.totalorder %s55, %s58
      %p67 = scmp.eq.s32.totalorder %s24, 1
      %p68 = por %p66, %p67
      %p69 = scmp.ne.s32.totalorder %s58, %s59
      %p70 = scmp.eq.s32.totalorder %s24, 0
      %p71 = por %p69, %p70
      %p72 = scmp.ne.s32.totalorder %s58, %s59
      %p73 = scmp.eq.s32.totalorder %s25, 1
      %p74 = por %p72, %p73
      %p76 = scmp.ne.s32.totalorder %s59, %s75
      %p77 = scmp.eq.s32.totalorder %s25, 0
      %p78 = por %p76, %p77
      %s79 = ssub.s32 %s19, %s26
      %p80 = scmp.eq.s32.totalorder %s79, 0
      %s82 = sadd.s32 %s81, 1
      %s83 = scalar_select %p80, %s81, %s82
      %p86 = pneg %p80
      %p87 = scmp.eq.s32.totalorder %s19, 1
      %p88 = por %p86, %p87
      %p89 = scmp.ne.s32.totalorder %s81, %s84
      %p90 = scmp.eq.s32.totalorder %s19, 0
      %p91 = por %p89, %p90
      %p92 = scmp.ne.s32.totalorder %s81, %s84
      %p93 = scmp.eq.s32.totalorder %s24, 1
      %p94 = por %p92, %p93
      %p95 = scmp.ne.s32.totalorder %s84, %s85
      %p96 = scmp.eq.s32.totalorder %s24, 0
      %p97 = por %p95, %p96
      %p98 = scmp.ne.s32.totalorder %s84, %s85
      %p99 = scmp.eq.s32.totalorder %s25, 1
      %p100 = por %p98, %p99
      %p102 = scmp.ne.s32.totalorder %s85, %s101
      %p103 = scmp.eq.s32.totalorder %s25, 0
      %p104 = por %p102, %p103
      %s105 = ssub.s32 %s19, %s26
      %p106 = scmp.eq.s32.totalorder %s105, 0
      %s108 = sadd.s32 %s107, 1
      %s109 = scalar_select %p106, %s107, %s108
      %p112 = pneg %p106
      %p113 = scmp.eq.s32.totalorder %s19, 1
      %p114 = por %p112, %p113
      %p115 = scmp.ne.s32.totalorder %s107, %s110
      %p116 = scmp.eq.s32.totalorder %s19, 0
      %p117 = por %p115, %p116
      %p118 = scmp.ne.s32.totalorder %s107, %s110
      %p119 = scmp.eq.s32.totalorder %s24, 1
      %p120 = por %p118, %p119
      %p121 = scmp.ne.s32.totalorder %s110, %s111
      %p122 = scmp.eq.s32.totalorder %s24, 0
      %p123 = por %p121, %p122
      %p124 = scmp.ne.s32.totalorder %s110, %s111
      %p125 = scmp.eq.s32.totalorder %s25, 1
      %p126 = por %p124, %p125
      %p128 = scmp.ne.s32.totalorder %s111, %s127
      %p129 = scmp.eq.s32.totalorder %s25, 0
      %p130 = por %p128, %p129
      %s131 = ssub.s32 %s19, %s26
      %p132 = scmp.eq.s32.totalorder %s131, 0
      %s134 = sadd.s32 %s133, 1
      %s135 = scalar_select %p132, %s133, %s134
      %p138 = pneg %p132
      %p139 = scmp.eq.s32.totalorder %s19, 1
      %p140 = por %p138, %p139
      %p141 = scmp.ne.s32.totalorder %s133, %s136
      %p142 = scmp.eq.s32.totalorder %s19, 0
      %p143 = por %p141, %p142
      %p144 = scmp.ne.s32.totalorder %s133, %s136
      %p145 = scmp.eq.s32.totalorder %s24, 1
      %p146 = por %p144, %p145
      %p147 = scmp.ne.s32.totalorder %s136, %s137
      %p148 = scmp.eq.s32.totalorder %s24, 0
      %p149 = por %p147, %p148
      %p150 = scmp.ne.s32.totalorder %s136, %s137
      %p151 = scmp.eq.s32.totalorder %s25, 1
      %p152 = por %p150, %p151
      %p154 = scmp.ne.s32.totalorder %s137, %s153
      %p155 = scmp.eq.s32.totalorder %s25, 0
      %p156 = por %p154, %p155
      %p157 = scmp.le.s32.totalorder 1, %s19
      %p158 = scmp.lt.s32.totalorder %s19, 3
      %p159 = pnand %p157, %p158
      %p160 = pneg %p159
      // Predicated region
      $region9: #{tpu_custom_call.1} parent=5 // pred_check
        _
      $region10: #{tpu_custom_call.1} parent=5 // pred_check_branch
        %162 = sbr.rel (%p159) target = $region12
      $region11: #{tpu_custom_call.1} parent=5 // pred_region
        %s163 = ssub.s32 %s19, 1
      $region12: #{tpu_custom_call.1} parent=5 // pred_fallthru
        _
      %p164 = scmp.lt.s32.totalorder %s19, 2
      // Predicated region
      $region13: #{tpu_custom_call.1} parent=5 // pred_check
        %p165 = pneg %p164
      $region14: #{tpu_custom_call.1} parent=5 // pred_check_branch
        %167 = sbr.rel (%p165) target = $region16
      $region15: #{tpu_custom_call.1} parent=5 // pred_region
        // Predicated region
        $region17: #{tpu_custom_call.1} parent=15 // pred_check
          %p168 = pneg %p39
        $region18: #{tpu_custom_call.1} parent=15 // pred_check_branch
          %170 = sbr.rel (%p168) target = $region20
        $region19: #{tpu_custom_call.1} parent=15 // pred_region
          %s171 = smul.u32 64, %s19
          %p172 = scmp.lt.s32.totalorder %s171, 127
          %s173 = scalar_select %p172, %s171, 127
          %s174 = smul.addr %s173, 8
          %s175 = scalar_lea.vmem %s0, %s174
          %s176 = smul.u32 64, %s19
        $region20: #{tpu_custom_call.1} parent=15 // pred_fallthru
          _
        // Predicated region
        $region21: #{tpu_custom_call.1} parent=15 // pred_check
          %p177 = pneg %p65
        $region22: #{tpu_custom_call.1} parent=15 // pred_check_branch
          %179 = sbr.rel (%p177) target = $region24
        $region23: #{tpu_custom_call.1} parent=15 // pred_region
          %s180 = sand.u32 %s55, 1
          %s181 = scalar_lea.sflag [#allocation3], %s180
          %s182 = sand.u32 %s55, 1
          %s183 = smul.addr %s182, 512
          %s184 = scalar_lea.vmem [#allocation2], %s183
          %s185 = smul.u32 64, %s19
          %s187 = ssub.s32 8192, 8192
          %188 = vsyncadd %s181, %s187
          %s189 = smul.addr %s185, 128
          %s190 = scalar_lea.hbm %s1, %s189
          %s191 = sshll.u32 %s184, 4
          %s192 = int_to_ptr.vmem [resolvable:$true] %s191
          %197 = dma.hbm_to_vmem [thread:$0]  %s190, 8192, %s192, %s181, 128, 128, 8
        $region24: #{tpu_custom_call.1} parent=15 // pred_fallthru
          _
        // Predicated region
        $region25: #{tpu_custom_call.1} parent=15 // pred_check
          %p198 = pneg %p91
        $region26: #{tpu_custom_call.1} parent=15 // pred_check_branch
          %200 = sbr.rel (%p198) target = $region28
        $region27: #{tpu_custom_call.1} parent=15 // pred_region
          %s201 = sand.u32 %s81, 1
          %s202 = scalar_lea.sflag [#allocation6], %s201
          %s203 = sand.u32 %s81, 1
          %s204 = smul.addr %s203, 512
          %s205 = scalar_lea.vmem [#allocation5], %s204
          %s206 = smul.u32 64, %s19
          %s208 = ssub.s32 8192, 8192
          %209 = vsyncadd %s202, %s208
          %s210 = smul.addr %s206, 128
          %s211 = scalar_lea.hbm %s2, %s210
          %s212 = sshll.u32 %s205, 4
          %s213 = int_to_ptr.vmem [resolvable:$true] %s212
          %218 = dma.hbm_to_vmem [thread:$0]  %s211, 8192, %s213, %s202, 128, 128, 8
        $region28: #{tpu_custom_call.1} parent=15 // pred_fallthru
          _
        // Predicated region
        $region29: #{tpu_custom_call.1} parent=15 // pred_check
          %p219 = pneg %p117
        $region30: #{tpu_custom_call.1} parent=15 // pred_check_branch
          %221 = sbr.rel (%p219) target = $region32
        $region31: #{tpu_custom_call.1} parent=15 // pred_region
          %s222 = smul.u32 64, %s19
          %p223 = scmp.lt.s32.totalorder %s222, 127
          %s224 = scalar_select %p223, %s222, 127
          %s225 = smul.addr %s224, 8
          %s226 = scalar_lea.vmem %s3, %s225
          %s227 = smul.u32 64, %s19
        $region32: #{tpu_custom_call.1} parent=15 // pred_fallthru
          _
      $region16: #{tpu_custom_call.1} parent=5 // pred_fallthru
        _
      %p228 = scmp.le.s32.totalorder 1, %s19
      %p229 = scmp.lt.s32.totalorder %s19, 3
      %p230 = pnand %p228, %p229
      %p231 = pneg %p230
      // Predicated region
      $region33: #{tpu_custom_call.1} parent=5 // pred_check
        _
      $region34: #{tpu_custom_call.1} parent=5 // pred_check_branch
        %233 = sbr.rel (%p230) target = $region36
      $region35: #{tpu_custom_call.1} parent=5 // pred_region
        %s234 = ssub.s32 %s19, 1
        %s235 = sand.u32 %s58, 1
        %s236 = scalar_lea.sflag [#allocation3], %s235
        %s237 = sand.u32 %s58, 1
        %s238 = smul.addr %s237, 512
        %s239 = scalar_lea.vmem [#allocation2], %s238
        // Predicated region
        $region37: #{tpu_custom_call.1} parent=35 // pred_check
          %p240 = pneg %p71
        $region38: #{tpu_custom_call.1} parent=35 // pred_check_branch
          %242 = sbr.rel (%p240) target = $region40
        $region39: #{tpu_custom_call.1} parent=35 // pred_region
          %243 = dma.done %s236, 8192
        $region40: #{tpu_custom_call.1} parent=35 // pred_fallthru
          _
        %s244 = sand.u32 %s84, 1
        %s245 = scalar_lea.sflag [#allocation6], %s244
        %s246 = sand.u32 %s84, 1
        %s247 = smul.addr %s246, 512
        %s248 = scalar_lea.vmem [#allocation5], %s247
        // Predicated region
        $region41: #{tpu_custom_call.1} parent=35 // pred_check
          %p249 = pneg %p97
        $region42: #{tpu_custom_call.1} parent=35 // pred_check_branch
          %251 = sbr.rel (%p249) target = $region44
        $region43: #{tpu_custom_call.1} parent=35 // pred_region
          %252 = dma.done %s245, 8192
        $region44: #{tpu_custom_call.1} parent=35 // pred_fallthru
          _
        %s253 = smul.u32 64, %s24
        %p254 = scmp.lt.s32.totalorder %s253, 127
        %s255 = scalar_select %p254, %s253, 127
        %s256 = smul.addr %s255, 8
        %s257 = scalar_lea.vmem %s0, %s256
        %p258 = pneg %p45
        %p259 = pneg %p42
        %s260 = sand.u32 %s58, 1
        %s261 = scalar_lea.sflag [#allocation3], %s260
        %s262 = sand.u32 %s58, 1
        %s263 = smul.addr %s262, 512
        %s264 = scalar_lea.vmem [#allocation2], %s263
        %p265 = pneg %p71
        %p266 = pneg %p68
        %s267 = sand.u32 %s84, 1
        %s268 = scalar_lea.sflag [#allocation6], %s267
        %s269 = sand.u32 %s84, 1
        %s270 = smul.addr %s269, 512
        %s271 = scalar_lea.vmem [#allocation5], %s270
        %p272 = pneg %p97
        %p273 = pneg %p94
        %s274 = smul.u32 64, %s24
        %p275 = scmp.lt.s32.totalorder %s274, 127
        %s276 = scalar_select %p275, %s274, 127
        %s277 = smul.addr %s276, 8
        %s278 = scalar_lea.vmem %s3, %s277
        %p279 = pneg %p123
        %p280 = pneg %p120
        %p281 = pneg %p149
        %p282 = pneg %p146
        %s283 = sand.u32 %s136, 1
        %s284 = scalar_lea.sflag [#allocation4], %s283
        %s285 = sand.u32 %s136, 1
        %s286 = smul.addr %s285, 512
        %s287 = scalar_lea.vmem [#allocation7], %s286
        %s288 = smul.u32 64, %s24
        %p289 = scmp.lt.s32.totalorder %s288, 127
        %s290 = scalar_select %p289, %s288, 127
        %s291 = smul.addr %s290, 8
        %s292 = scalar_lea.vmem %s0, %s291
        %s293 = smul.u32 64, %s24
        %s294 = smul.u32 64, %s24
        %s295 = smul.u32 64, %s24
        %s296 = smul.u32 64, %s24
        %p297 = scmp.lt.s32.totalorder %s296, 127
        %s298 = scalar_select %p297, %s296, 127
        %s299 = smul.addr %s298, 8
        %s300 = scalar_lea.vmem %s3, %s299
        %s301 = smul.u32 64, %s24
        %s302 = smul.u32 64, %s24
        %v303 = vld [vmem:[%s300] sm:$0xff]
        %v304 = vld [vmem:[%s300 + $0x8] sm:$0xff]
        %v305 = vld [vmem:[%s300 + $0x10] sm:$0xff]
        %v306 = vld [vmem:[%s300 + $0x18] sm:$0xff]
        %v307 = vld [vmem:[%s300 + $0x20] sm:$0xff]
        %v308 = vld [vmem:[%s300 + $0x28] sm:$0xff]
        %v309 = vld [vmem:[%s300 + $0x30] sm:$0xff]
        %v310 = vld [vmem:[%s300 + $0x38] sm:$0xff]
        %v311 = vld [vmem:[%s300 + $0x40] sm:$0xff]
        %v312 = vld [vmem:[%s300 + $0x48] sm:$0xff]
        %v313 = vld [vmem:[%s300 + $0x50] sm:$0xff]
        %v314 = vld [vmem:[%s300 + $0x58] sm:$0xff]
        %v315 = vld [vmem:[%s300 + $0x60] sm:$0xff]
        %v316 = vld [vmem:[%s300 + $0x68] sm:$0xff]
        %v317 = vld [vmem:[%s300 + $0x70] sm:$0xff]
        %v318 = vld [vmem:[%s300 + $0x78] sm:$0xff]
        %v319 = vld [vmem:[%s300 + $0x80] sm:$0xff]
        %v320 = vld [vmem:[%s300 + $0x88] sm:$0xff]
        %v321 = vld [vmem:[%s300 + $0x90] sm:$0xff]
        %v322 = vld [vmem:[%s300 + $0x98] sm:$0xff]
        %v323 = vld [vmem:[%s300 + $0xa0] sm:$0xff]
        %v324 = vld [vmem:[%s300 + $0xa8] sm:$0xff]
        %v325 = vld [vmem:[%s300 + $0xb0] sm:$0xff]
        %v326 = vld [vmem:[%s300 + $0xb8] sm:$0xff]
        %v327 = vld [vmem:[%s300 + $0xc0] sm:$0xff]
        %v328 = vld [vmem:[%s300 + $0xc8] sm:$0xff]
        %v329 = vld [vmem:[%s300 + $0xd0] sm:$0xff]
        %v330 = vld [vmem:[%s300 + $0xd8] sm:$0xff]
        %v331 = vld [vmem:[%s300 + $0xe0] sm:$0xff]
        %v332 = vld [vmem:[%s300 + $0xe8] sm:$0xff]
        %v333 = vld [vmem:[%s300 + $0xf0] sm:$0xff]
        %v334 = vld [vmem:[%s300 + $0xf8] sm:$0xff]
        %v335 = vld [vmem:[%s300 + $0x100] sm:$0xff]
        %v336 = vld [vmem:[%s300 + $0x108] sm:$0xff]
        %v337 = vld [vmem:[%s300 + $0x110] sm:$0xff]
        %v338 = vld [vmem:[%s300 + $0x118] sm:$0xff]
        %v339 = vld [vmem:[%s300 + $0x120] sm:$0xff]
        %v340 = vld [vmem:[%s300 + $0x128] sm:$0xff]
        %v341 = vld [vmem:[%s300 + $0x130] sm:$0xff]
        %v342 = vld [vmem:[%s300 + $0x138] sm:$0xff]
        %v343 = vld [vmem:[%s300 + $0x140] sm:$0xff]
        %v344 = vld [vmem:[%s300 + $0x148] sm:$0xff]
        %v345 = vld [vmem:[%s300 + $0x150] sm:$0xff]
        %v346 = vld [vmem:[%s300 + $0x158] sm:$0xff]
        %v347 = vld [vmem:[%s300 + $0x160] sm:$0xff]
        %v348 = vld [vmem:[%s300 + $0x168] sm:$0xff]
        %v349 = vld [vmem:[%s300 + $0x170] sm:$0xff]
        %v350 = vld [vmem:[%s300 + $0x178] sm:$0xff]
        %v351 = vld [vmem:[%s300 + $0x180] sm:$0xff]
        %v352 = vld [vmem:[%s300 + $0x188] sm:$0xff]
        %v353 = vld [vmem:[%s300 + $0x190] sm:$0xff]
        %v354 = vld [vmem:[%s300 + $0x198] sm:$0xff]
        %v355 = vld [vmem:[%s300 + $0x1a0] sm:$0xff]
        %v356 = vld [vmem:[%s300 + $0x1a8] sm:$0xff]
        %v357 = vld [vmem:[%s300 + $0x1b0] sm:$0xff]
        %v358 = vld [vmem:[%s300 + $0x1b8] sm:$0xff]
        %v359 = vld [vmem:[%s300 + $0x1c0] sm:$0xff]
        %v360 = vld [vmem:[%s300 + $0x1c8] sm:$0xff]
        %v361 = vld [vmem:[%s300 + $0x1d0] sm:$0xff]
        %v362 = vld [vmem:[%s300 + $0x1d8] sm:$0xff]
        %v363 = vld [vmem:[%s300 + $0x1e0] sm:$0xff]
        %v364 = vld [vmem:[%s300 + $0x1e8] sm:$0xff]
        %v365 = vld [vmem:[%s300 + $0x1f0] sm:$0xff]
        %v366 = vld [vmem:[%s300 + $0x1f8] sm:$0xff]
        %v367 = vld [vmem:[%s292] sm:$0xff]
        %v368 = vld [vmem:[%s292 + $0x8] sm:$0xff]
        %v369 = vld [vmem:[%s292 + $0x10] sm:$0xff]
        %v370 = vld [vmem:[%s292 + $0x18] sm:$0xff]
        %v371 = vld [vmem:[%s292 + $0x20] sm:$0xff]
        %v372 = vld [vmem:[%s292 + $0x28] sm:$0xff]
        %v373 = vld [vmem:[%s292 + $0x30] sm:$0xff]
        %v374 = vld [vmem:[%s292 + $0x38] sm:$0xff]
        %v375 = vld [vmem:[%s292 + $0x40] sm:$0xff]
        %v376 = vld [vmem:[%s292 + $0x48] sm:$0xff]
        %v377 = vld [vmem:[%s292 + $0x50] sm:$0xff]
        %v378 = vld [vmem:[%s292 + $0x58] sm:$0xff]
        %v379 = vld [vmem:[%s292 + $0x60] sm:$0xff]
        %v380 = vld [vmem:[%s292 + $0x68] sm:$0xff]
        %v381 = vld [vmem:[%s292 + $0x70] sm:$0xff]
        %v382 = vld [vmem:[%s292 + $0x78] sm:$0xff]
        %v383 = vld [vmem:[%s292 + $0x80] sm:$0xff]
        %v384 = vld [vmem:[%s292 + $0x88] sm:$0xff]
        %v385 = vld [vmem:[%s292 + $0x90] sm:$0xff]
        %v386 = vld [vmem:[%s292 + $0x98] sm:$0xff]
        %v387 = vld [vmem:[%s292 + $0xa0] sm:$0xff]
        %v388 = vld [vmem:[%s292 + $0xa8] sm:$0xff]
        %v389 = vld [vmem:[%s292 + $0xb0] sm:$0xff]
        %v390 = vld [vmem:[%s292 + $0xb8] sm:$0xff]
        %v391 = vld [vmem:[%s292 + $0xc0] sm:$0xff]
        %v392 = vld [vmem:[%s292 + $0xc8] sm:$0xff]
        %v393 = vld [vmem:[%s292 + $0xd0] sm:$0xff]
        %v394 = vld [vmem:[%s292 + $0xd8] sm:$0xff]
        %v395 = vld [vmem:[%s292 + $0xe0] sm:$0xff]
        %v396 = vld [vmem:[%s292 + $0xe8] sm:$0xff]
        %v397 = vld [vmem:[%s292 + $0xf0] sm:$0xff]
        %v398 = vld [vmem:[%s292 + $0xf8] sm:$0xff]
        %v399 = vld [vmem:[%s292 + $0x100] sm:$0xff]
        %v400 = vld [vmem:[%s292 + $0x108] sm:$0xff]
        %v401 = vld [vmem:[%s292 + $0x110] sm:$0xff]
        %v402 = vld [vmem:[%s292 + $0x118] sm:$0xff]
        %v403 = vld [vmem:[%s292 + $0x120] sm:$0xff]
        %v404 = vld [vmem:[%s292 + $0x128] sm:$0xff]
        %v405 = vld [vmem:[%s292 + $0x130] sm:$0xff]
        %v406 = vld [vmem:[%s292 + $0x138] sm:$0xff]
        %v407 = vld [vmem:[%s292 + $0x140] sm:$0xff]
        %v408 = vld [vmem:[%s292 + $0x148] sm:$0xff]
        %v409 = vld [vmem:[%s292 + $0x150] sm:$0xff]
        %v410 = vld [vmem:[%s292 + $0x158] sm:$0xff]
        %v411 = vld [vmem:[%s292 + $0x160] sm:$0xff]
        %v412 = vld [vmem:[%s292 + $0x168] sm:$0xff]
        %v413 = vld [vmem:[%s292 + $0x170] sm:$0xff]
        %v414 = vld [vmem:[%s292 + $0x178] sm:$0xff]
        %v415 = vld [vmem:[%s292 + $0x180] sm:$0xff]
        %v416 = vld [vmem:[%s292 + $0x188] sm:$0xff]
        %v417 = vld [vmem:[%s292 + $0x190] sm:$0xff]
        %v418 = vld [vmem:[%s292 + $0x198] sm:$0xff]
        %v419 = vld [vmem:[%s292 + $0x1a0] sm:$0xff]
        %v420 = vld [vmem:[%s292 + $0x1a8] sm:$0xff]
        %v421 = vld [vmem:[%s292 + $0x1b0] sm:$0xff]
        %v422 = vld [vmem:[%s292 + $0x1b8] sm:$0xff]
        %v423 = vld [vmem:[%s292 + $0x1c0] sm:$0xff]
        %v424 = vld [vmem:[%s292 + $0x1c8] sm:$0xff]
        %v425 = vld [vmem:[%s292 + $0x1d0] sm:$0xff]
        %v426 = vld [vmem:[%s292 + $0x1d8] sm:$0xff]
        %v427 = vld [vmem:[%s292 + $0x1e0] sm:$0xff]
        %v428 = vld [vmem:[%s292 + $0x1e8] sm:$0xff]
        %v429 = vld [vmem:[%s292 + $0x1f0] sm:$0xff]
        %v430 = vld [vmem:[%s292 + $0x1f8] sm:$0xff]
        %432 = vset.pattern.permute.xlu0 0
        %433 = vperm.xlu0 %432, %v303
        %v434 = vpop.permute.xlu0 %433
        %437 = vset.pattern.permute.xlu0 0
        %438 = vperm.xlu0 %437, %v304
        %v439 = vpop.permute.xlu0 %438
        %442 = vset.pattern.permute.xlu0 0
        %443 = vperm.xlu0 %442, %v305
        %v444 = vpop.permute.xlu0 %443
        %447 = vset.pattern.permute.xlu0 0
        %448 = vperm.xlu0 %447, %v306
        %v449 = vpop.permute.xlu0 %448
        %452 = vset.pattern.permute.xlu0 0
        %453 = vperm.xlu0 %452, %v307
        %v454 = vpop.permute.xlu0 %453
        %457 = vset.pattern.permute.xlu0 0
        %458 = vperm.xlu0 %457, %v308
        %v459 = vpop.permute.xlu0 %458
        %462 = vset.pattern.permute.xlu0 0
        %463 = vperm.xlu0 %462, %v309
        %v464 = vpop.permute.xlu0 %463
        %467 = vset.pattern.permute.xlu0 0
        %468 = vperm.xlu0 %467, %v310
        %v469 = vpop.permute.xlu0 %468
        %472 = vset.pattern.permute.xlu0 0
        %473 = vperm.xlu0 %472, %v311
        %v474 = vpop.permute.xlu0 %473
        %477 = vset.pattern.permute.xlu0 0
        %478 = vperm.xlu0 %477, %v312
        %v479 = vpop.permute.xlu0 %478
        %482 = vset.pattern.permute.xlu0 0
        %483 = vperm.xlu0 %482, %v313
        %v484 = vpop.permute.xlu0 %483
        %487 = vset.pattern.permute.xlu0 0
        %488 = vperm.xlu0 %487, %v314
        %v489 = vpop.permute.xlu0 %488
        %492 = vset.pattern.permute.xlu0 0
        %493 = vperm.xlu0 %492, %v315
        %v494 = vpop.permute.xlu0 %493
        %497 = vset.pattern.permute.xlu0 0
        %498 = vperm.xlu0 %497, %v316
        %v499 = vpop.permute.xlu0 %498
        %502 = vset.pattern.permute.xlu0 0
        %503 = vperm.xlu0 %502, %v317
        %v504 = vpop.permute.xlu0 %503
        %507 = vset.pattern.permute.xlu0 0
        %508 = vperm.xlu0 %507, %v318
        %v509 = vpop.permute.xlu0 %508
        %512 = vset.pattern.permute.xlu0 0
        %513 = vperm.xlu0 %512, %v319
        %v514 = vpop.permute.xlu0 %513
        %517 = vset.pattern.permute.xlu0 0
        %518 = vperm.xlu0 %517, %v320
        %v519 = vpop.permute.xlu0 %518
        %522 = vset.pattern.permute.xlu0 0
        %523 = vperm.xlu0 %522, %v321
        %v524 = vpop.permute.xlu0 %523
        %527 = vset.pattern.permute.xlu0 0
        %528 = vperm.xlu0 %527, %v322
        %v529 = vpop.permute.xlu0 %528
        %532 = vset.pattern.permute.xlu0 0
        %533 = vperm.xlu0 %532, %v323
        %v534 = vpop.permute.xlu0 %533
        %537 = vset.pattern.permute.xlu0 0
        %538 = vperm.xlu0 %537, %v324
        %v539 = vpop.permute.xlu0 %538
        %542 = vset.pattern.permute.xlu0 0
        %543 = vperm.xlu0 %542, %v325
        %v544 = vpop.permute.xlu0 %543
        %547 = vset.pattern.permute.xlu0 0
        %548 = vperm.xlu0 %547, %v326
        %v549 = vpop.permute.xlu0 %548
        %552 = vset.pattern.permute.xlu0 0
        %553 = vperm.xlu0 %552, %v327
        %v554 = vpop.permute.xlu0 %553
        %557 = vset.pattern.permute.xlu0 0
        %558 = vperm.xlu0 %557, %v328
        %v559 = vpop.permute.xlu0 %558
        %562 = vset.pattern.permute.xlu0 0
        %563 = vperm.xlu0 %562, %v329
        %v564 = vpop.permute.xlu0 %563
        %567 = vset.pattern.permute.xlu0 0
        %568 = vperm.xlu0 %567, %v330
        %v569 = vpop.permute.xlu0 %568
        %572 = vset.pattern.permute.xlu0 0
        %573 = vperm.xlu0 %572, %v331
        %v574 = vpop.permute.xlu0 %573
        %577 = vset.pattern.permute.xlu0 0
        %578 = vperm.xlu0 %577, %v332
        %v579 = vpop.permute.xlu0 %578
        %582 = vset.pattern.permute.xlu0 0
        %583 = vperm.xlu0 %582, %v333
        %v584 = vpop.permute.xlu0 %583
        %587 = vset.pattern.permute.xlu0 0
        %588 = vperm.xlu0 %587, %v334
        %v589 = vpop.permute.xlu0 %588
        %592 = vset.pattern.permute.xlu0 0
        %593 = vperm.xlu0 %592, %v335
        %v594 = vpop.permute.xlu0 %593
        %597 = vset.pattern.permute.xlu0 0
        %598 = vperm.xlu0 %597, %v336
        %v599 = vpop.permute.xlu0 %598
        %602 = vset.pattern.permute.xlu0 0
        %603 = vperm.xlu0 %602, %v337
        %v604 = vpop.permute.xlu0 %603
        %607 = vset.pattern.permute.xlu0 0
        %608 = vperm.xlu0 %607, %v338
        %v609 = vpop.permute.xlu0 %608
        %612 = vset.pattern.permute.xlu0 0
        %613 = vperm.xlu0 %612, %v339
        %v614 = vpop.permute.xlu0 %613
        %617 = vset.pattern.permute.xlu0 0
        %618 = vperm.xlu0 %617, %v340
        %v619 = vpop.permute.xlu0 %618
        %622 = vset.pattern.permute.xlu0 0
        %623 = vperm.xlu0 %622, %v341
        %v624 = vpop.permute.xlu0 %623
        %627 = vset.pattern.permute.xlu0 0
        %628 = vperm.xlu0 %627, %v342
        %v629 = vpop.permute.xlu0 %628
        %632 = vset.pattern.permute.xlu0 0
        %633 = vperm.xlu0 %632, %v343
        %v634 = vpop.permute.xlu0 %633
        %637 = vset.pattern.permute.xlu0 0
        %638 = vperm.xlu0 %637, %v344
        %v639 = vpop.permute.xlu0 %638
        %642 = vset.pattern.permute.xlu0 0
        %643 = vperm.xlu0 %642, %v345
        %v644 = vpop.permute.xlu0 %643
        %647 = vset.pattern.permute.xlu0 0
        %648 = vperm.xlu0 %647, %v346
        %v649 = vpop.permute.xlu0 %648
        %652 = vset.pattern.permute.xlu0 0
        %653 = vperm.xlu0 %652, %v347
        %v654 = vpop.permute.xlu0 %653
        %657 = vset.pattern.permute.xlu0 0
        %658 = vperm.xlu0 %657, %v348
        %v659 = vpop.permute.xlu0 %658
        %662 = vset.pattern.permute.xlu0 0
        %663 = vperm.xlu0 %662, %v349
        %v664 = vpop.permute.xlu0 %663
        %667 = vset.pattern.permute.xlu0 0
        %668 = vperm.xlu0 %667, %v350
        %v669 = vpop.permute.xlu0 %668
        %672 = vset.pattern.permute.xlu0 0
        %673 = vperm.xlu0 %672, %v351
        %v674 = vpop.permute.xlu0 %673
        %677 = vset.pattern.permute.xlu0 0
        %678 = vperm.xlu0 %677, %v352
        %v679 = vpop.permute.xlu0 %678
        %682 = vset.pattern.permute.xlu0 0
        %683 = vperm.xlu0 %682, %v353
        %v684 = vpop.permute.xlu0 %683
        %687 = vset.pattern.permute.xlu0 0
        %688 = vperm.xlu0 %687, %v354
        %v689 = vpop.permute.xlu0 %688
        %692 = vset.pattern.permute.xlu0 0
        %693 = vperm.xlu0 %692, %v355
        %v694 = vpop.permute.xlu0 %693
        %697 = vset.pattern.permute.xlu0 0
        %698 = vperm.xlu0 %697, %v356
        %v699 = vpop.permute.xlu0 %698
        %702 = vset.pattern.permute.xlu0 0
        %703 = vperm.xlu0 %702, %v357
        %v704 = vpop.permute.xlu0 %703
        %707 = vset.pattern.permute.xlu0 0
        %708 = vperm.xlu0 %707, %v358
        %v709 = vpop.permute.xlu0 %708
        %712 = vset.pattern.permute.xlu0 0
        %713 = vperm.xlu0 %712, %v359
        %v714 = vpop.permute.xlu0 %713
        %717 = vset.pattern.permute.xlu0 0
        %718 = vperm.xlu0 %717, %v360
        %v719 = vpop.permute.xlu0 %718
        %722 = vset.pattern.permute.xlu0 0
        %723 = vperm.xlu0 %722, %v361
        %v724 = vpop.permute.xlu0 %723
        %727 = vset.pattern.permute.xlu0 0
        %728 = vperm.xlu0 %727, %v362
        %v729 = vpop.permute.xlu0 %728
        %732 = vset.pattern.permute.xlu0 0
        %733 = vperm.xlu0 %732, %v363
        %v734 = vpop.permute.xlu0 %733
        %737 = vset.pattern.permute.xlu0 0
        %738 = vperm.xlu0 %737, %v364
        %v739 = vpop.permute.xlu0 %738
        %742 = vset.pattern.permute.xlu0 0
        %743 = vperm.xlu0 %742, %v365
        %v744 = vpop.permute.xlu0 %743
        %747 = vset.pattern.permute.xlu0 0
        %748 = vperm.xlu0 %747, %v366
        %v749 = vpop.permute.xlu0 %748
        %v751 = vmul.f32 %v367, %v434
        %v752 = vmul.f32 %v368, %v439
        %v753 = vmul.f32 %v369, %v444
        %v754 = vmul.f32 %v370, %v449
        %v755 = vmul.f32 %v371, %v454
        %v756 = vmul.f32 %v372, %v459
        %v757 = vmul.f32 %v373, %v464
        %v758 = vmul.f32 %v374, %v469
        %v759 = vmul.f32 %v375, %v474
        %v760 = vmul.f32 %v376, %v479
        %v761 = vmul.f32 %v377, %v484
        %v762 = vmul.f32 %v378, %v489
        %v763 = vmul.f32 %v379, %v494
        %v764 = vmul.f32 %v380, %v499
        %v765 = vmul.f32 %v381, %v504
        %v766 = vmul.f32 %v382, %v509
        %v767 = vmul.f32 %v383, %v514
        %v768 = vmul.f32 %v384, %v519
        %v769 = vmul.f32 %v385, %v524
        %v770 = vmul.f32 %v386, %v529
        %v771 = vmul.f32 %v387, %v534
        %v772 = vmul.f32 %v388, %v539
        %v773 = vmul.f32 %v389, %v544
        %v774 = vmul.f32 %v390, %v549
        %v775 = vmul.f32 %v391, %v554
        %v776 = vmul.f32 %v392, %v559
        %v777 = vmul.f32 %v393, %v564
        %v778 = vmul.f32 %v394, %v569
        %v779 = vmul.f32 %v395, %v574
        %v780 = vmul.f32 %v396, %v579
        %v781 = vmul.f32 %v397, %v584
        %v782 = vmul.f32 %v398, %v589
        %v783 = vmul.f32 %v399, %v594
        %v784 = vmul.f32 %v400, %v599
        %v785 = vmul.f32 %v401, %v604
        %v786 = vmul.f32 %v402, %v609
        %v787 = vmul.f32 %v403, %v614
        %v788 = vmul.f32 %v404, %v619
        %v789 = vmul.f32 %v405, %v624
        %v790 = vmul.f32 %v406, %v629
        %v791 = vmul.f32 %v407, %v634
        %v792 = vmul.f32 %v408, %v639
        %v793 = vmul.f32 %v409, %v644
        %v794 = vmul.f32 %v410, %v649
        %v795 = vmul.f32 %v411, %v654
        %v796 = vmul.f32 %v412, %v659
        %v797 = vmul.f32 %v413, %v664
        %v798 = vmul.f32 %v414, %v669
        %v799 = vmul.f32 %v415, %v674
        %v800 = vmul.f32 %v416, %v679
        %v801 = vmul.f32 %v417, %v684
        %v802 = vmul.f32 %v418, %v689
        %v803 = vmul.f32 %v419, %v694
        %v804 = vmul.f32 %v420, %v699
        %v805 = vmul.f32 %v421, %v704
        %v806 = vmul.f32 %v422, %v709
        %v807 = vmul.f32 %v423, %v714
        %v808 = vmul.f32 %v424, %v719
        %v809 = vmul.f32 %v425, %v724
        %v810 = vmul.f32 %v426, %v729
        %v811 = vmul.f32 %v427, %v734
        %v812 = vmul.f32 %v428, %v739
        %v813 = vmul.f32 %v429, %v744
        %v814 = vmul.f32 %v430, %v749
        %v815 = vld [vmem:[%s239] sm:$0xff]
        %v816 = vld [vmem:[%s239 + $0x8] sm:$0xff]
        %v817 = vld [vmem:[%s239 + $0x10] sm:$0xff]
        %v818 = vld [vmem:[%s239 + $0x18] sm:$0xff]
        %v819 = vld [vmem:[%s239 + $0x20] sm:$0xff]
        %v820 = vld [vmem:[%s239 + $0x28] sm:$0xff]
        %v821 = vld [vmem:[%s239 + $0x30] sm:$0xff]
        %v822 = vld [vmem:[%s239 + $0x38] sm:$0xff]
        %v823 = vld [vmem:[%s239 + $0x40] sm:$0xff]
        %v824 = vld [vmem:[%s239 + $0x48] sm:$0xff]
        %v825 = vld [vmem:[%s239 + $0x50] sm:$0xff]
        %v826 = vld [vmem:[%s239 + $0x58] sm:$0xff]
        %v827 = vld [vmem:[%s239 + $0x60] sm:$0xff]
        %v828 = vld [vmem:[%s239 + $0x68] sm:$0xff]
        %v829 = vld [vmem:[%s239 + $0x70] sm:$0xff]
        %v830 = vld [vmem:[%s239 + $0x78] sm:$0xff]
        %v831 = vld [vmem:[%s239 + $0x80] sm:$0xff]
        %v832 = vld [vmem:[%s239 + $0x88] sm:$0xff]
        %v833 = vld [vmem:[%s239 + $0x90] sm:$0xff]
        %v834 = vld [vmem:[%s239 + $0x98] sm:$0xff]
        %v835 = vld [vmem:[%s239 + $0xa0] sm:$0xff]
        %v836 = vld [vmem:[%s239 + $0xa8] sm:$0xff]
        %v837 = vld [vmem:[%s239 + $0xb0] sm:$0xff]
        %v838 = vld [vmem:[%s239 + $0xb8] sm:$0xff]
        %v839 = vld [vmem:[%s239 + $0xc0] sm:$0xff]
        %v840 = vld [vmem:[%s239 + $0xc8] sm:$0xff]
        %v841 = vld [vmem:[%s239 + $0xd0] sm:$0xff]
        %v842 = vld [vmem:[%s239 + $0xd8] sm:$0xff]
        %v843 = vld [vmem:[%s239 + $0xe0] sm:$0xff]
        %v844 = vld [vmem:[%s239 + $0xe8] sm:$0xff]
        %v845 = vld [vmem:[%s239 + $0xf0] sm:$0xff]
        %v846 = vld [vmem:[%s239 + $0xf8] sm:$0xff]
        %v847 = vld [vmem:[%s239 + $0x100] sm:$0xff]
        %v848 = vld [vmem:[%s239 + $0x108] sm:$0xff]
        %v849 = vld [vmem:[%s239 + $0x110] sm:$0xff]
        %v850 = vld [vmem:[%s239 + $0x118] sm:$0xff]
        %v851 = vld [vmem:[%s239 + $0x120] sm:$0xff]
        %v852 = vld [vmem:[%s239 + $0x128] sm:$0xff]
        %v853 = vld [vmem:[%s239 + $0x130] sm:$0xff]
        %v854 = vld [vmem:[%s239 + $0x138] sm:$0xff]
        %v855 = vld [vmem:[%s239 + $0x140] sm:$0xff]
        %v856 = vld [vmem:[%s239 + $0x148] sm:$0xff]
        %v857 = vld [vmem:[%s239 + $0x150] sm:$0xff]
        %v858 = vld [vmem:[%s239 + $0x158] sm:$0xff]
        %v859 = vld [vmem:[%s239 + $0x160] sm:$0xff]
        %v860 = vld [vmem:[%s239 + $0x168] sm:$0xff]
        %v861 = vld [vmem:[%s239 + $0x170] sm:$0xff]
        %v862 = vld [vmem:[%s239 + $0x178] sm:$0xff]
        %v863 = vld [vmem:[%s239 + $0x180] sm:$0xff]
        %v864 = vld [vmem:[%s239 + $0x188] sm:$0xff]
        %v865 = vld [vmem:[%s239 + $0x190] sm:$0xff]
        %v866 = vld [vmem:[%s239 + $0x198] sm:$0xff]
        %v867 = vld [vmem:[%s239 + $0x1a0] sm:$0xff]
        %v868 = vld [vmem:[%s239 + $0x1a8] sm:$0xff]
        %v869 = vld [vmem:[%s239 + $0x1b0] sm:$0xff]
        %v870 = vld [vmem:[%s239 + $0x1b8] sm:$0xff]
        %v871 = vld [vmem:[%s239 + $0x1c0] sm:$0xff]
        %v872 = vld [vmem:[%s239 + $0x1c8] sm:$0xff]
        %v873 = vld [vmem:[%s239 + $0x1d0] sm:$0xff]
        %v874 = vld [vmem:[%s239 + $0x1d8] sm:$0xff]
        %v875 = vld [vmem:[%s239 + $0x1e0] sm:$0xff]
        %v876 = vld [vmem:[%s239 + $0x1e8] sm:$0xff]
        %v877 = vld [vmem:[%s239 + $0x1f0] sm:$0xff]
        %v878 = vld [vmem:[%s239 + $0x1f8] sm:$0xff]
        %879 = vset.pattern.permute.xlu0 1
        %880 = vperm.xlu0 %879, %v303
        %v881 = vpop.permute.xlu0 %880
        %883 = vset.pattern.permute.xlu0 1
        %884 = vperm.xlu0 %883, %v304
        %v885 = vpop.permute.xlu0 %884
        %887 = vset.pattern.permute.xlu0 1
        %888 = vperm.xlu0 %887, %v305
        %v889 = vpop.permute.xlu0 %888
        %891 = vset.pattern.permute.xlu0 1
        %892 = vperm.xlu0 %891, %v306
        %v893 = vpop.permute.xlu0 %892
        %895 = vset.pattern.permute.xlu0 1
        %896 = vperm.xlu0 %895, %v307
        %v897 = vpop.permute.xlu0 %896
        %899 = vset.pattern.permute.xlu0 1
        %900 = vperm.xlu0 %899, %v308
        %v901 = vpop.permute.xlu0 %900
        %903 = vset.pattern.permute.xlu0 1
        %904 = vperm.xlu0 %903, %v309
        %v905 = vpop.permute.xlu0 %904
        %907 = vset.pattern.permute.xlu0 1
        %908 = vperm.xlu0 %907, %v310
        %v909 = vpop.permute.xlu0 %908
        %911 = vset.pattern.permute.xlu0 1
        %912 = vperm.xlu0 %911, %v311
        %v913 = vpop.permute.xlu0 %912
        %915 = vset.pattern.permute.xlu0 1
        %916 = vperm.xlu0 %915, %v312
        %v917 = vpop.permute.xlu0 %916
        %919 = vset.pattern.permute.xlu0 1
        %920 = vperm.xlu0 %919, %v313
        %v921 = vpop.permute.xlu0 %920
        %923 = vset.pattern.permute.xlu0 1
        %924 = vperm.xlu0 %923, %v314
        %v925 = vpop.permute.xlu0 %924
        %927 = vset.pattern.permute.xlu0 1
        %928 = vperm.xlu0 %927, %v315
        %v929 = vpop.permute.xlu0 %928
        %931 = vset.pattern.permute.xlu0 1
        %932 = vperm.xlu0 %931, %v316
        %v933 = vpop.permute.xlu0 %932
        %935 = vset.pattern.permute.xlu0 1
        %936 = vperm.xlu0 %935, %v317
        %v937 = vpop.permute.xlu0 %936
        %939 = vset.pattern.permute.xlu0 1
        %940 = vperm.xlu0 %939, %v318
        %v941 = vpop.permute.xlu0 %940
        %943 = vset.pattern.permute.xlu0 1
        %944 = vperm.xlu0 %943, %v319
        %v945 = vpop.permute.xlu0 %944
        %947 = vset.pattern.permute.xlu0 1
        %948 = vperm.xlu0 %947, %v320
        %v949 = vpop.permute.xlu0 %948
        %951 = vset.pattern.permute.xlu0 1
        %952 = vperm.xlu0 %951, %v321
        %v953 = vpop.permute.xlu0 %952
        %955 = vset.pattern.permute.xlu0 1
        %956 = vperm.xlu0 %955, %v322
        %v957 = vpop.permute.xlu0 %956
        %959 = vset.pattern.permute.xlu0 1
        %960 = vperm.xlu0 %959, %v323
        %v961 = vpop.permute.xlu0 %960
        %963 = vset.pattern.permute.xlu0 1
        %964 = vperm.xlu0 %963, %v324
        %v965 = vpop.permute.xlu0 %964
        %967 = vset.pattern.permute.xlu0 1
        %968 = vperm.xlu0 %967, %v325
        %v969 = vpop.permute.xlu0 %968
        %971 = vset.pattern.permute.xlu0 1
        %972 = vperm.xlu0 %971, %v326
        %v973 = vpop.permute.xlu0 %972
        %975 = vset.pattern.permute.xlu0 1
        %976 = vperm.xlu0 %975, %v327
        %v977 = vpop.permute.xlu0 %976
        %979 = vset.pattern.permute.xlu0 1
        %980 = vperm.xlu0 %979, %v328
        %v981 = vpop.permute.xlu0 %980
        %983 = vset.pattern.permute.xlu0 1
        %984 = vperm.xlu0 %983, %v329
        %v985 = vpop.permute.xlu0 %984
        %987 = vset.pattern.permute.xlu0 1
        %988 = vperm.xlu0 %987, %v330
        %v989 = vpop.permute.xlu0 %988
        %991 = vset.pattern.permute.xlu0 1
        %992 = vperm.xlu0 %991, %v331
        %v993 = vpop.permute.xlu0 %992
        %995 = vset.pattern.permute.xlu0 1
        %996 = vperm.xlu0 %995, %v332
        %v997 = vpop.permute.xlu0 %996
        %999 = vset.pattern.permute.xlu0 1
        %1000 = vperm.xlu0 %999, %v333
        %v1001 = vpop.permute.xlu0 %1000
        %1003 = vset.pattern.permute.xlu0 1
        %1004 = vperm.xlu0 %1003, %v334
        %v1005 = vpop.permute.xlu0 %1004
        %1007 = vset.pattern.permute.xlu0 1
        %1008 = vperm.xlu0 %1007, %v335
        %v1009 = vpop.permute.xlu0 %1008
        %1011 = vset.pattern.permute.xlu0 1
        %1012 = vperm.xlu0 %1011, %v336
        %v1013 = vpop.permute.xlu0 %1012
        %1015 = vset.pattern.permute.xlu0 1
        %1016 = vperm.xlu0 %1015, %v337
        %v1017 = vpop.permute.xlu0 %1016
        %1019 = vset.pattern.permute.xlu0 1
        %1020 = vperm.xlu0 %1019, %v338
        %v1021 = vpop.permute.xlu0 %1020
        %1023 = vset.pattern.permute.xlu0 1
        %1024 = vperm.xlu0 %1023, %v339
        %v1025 = vpop.permute.xlu0 %1024
        %1027 = vset.pattern.permute.xlu0 1
        %1028 = vperm.xlu0 %1027, %v340
        %v1029 = vpop.permute.xlu0 %1028
        %1031 = vset.pattern.permute.xlu0 1
        %1032 = vperm.xlu0 %1031, %v341
        %v1033 = vpop.permute.xlu0 %1032
        %1035 = vset.pattern.permute.xlu0 1
        %1036 = vperm.xlu0 %1035, %v342
        %v1037 = vpop.permute.xlu0 %1036
        %1039 = vset.pattern.permute.xlu0 1
        %1040 = vperm.xlu0 %1039, %v343
        %v1041 = vpop.permute.xlu0 %1040
        %1043 = vset.pattern.permute.xlu0 1
        %1044 = vperm.xlu0 %1043, %v344
        %v1045 = vpop.permute.xlu0 %1044
        %1047 = vset.pattern.permute.xlu0 1
        %1048 = vperm.xlu0 %1047, %v345
        %v1049 = vpop.permute.xlu0 %1048
        %1051 = vset.pattern.permute.xlu0 1
        %1052 = vperm.xlu0 %1051, %v346
        %v1053 = vpop.permute.xlu0 %1052
        %1055 = vset.pattern.permute.xlu0 1
        %1056 = vperm.xlu0 %1055, %v347
        %v1057 = vpop.permute.xlu0 %1056
        %1059 = vset.pattern.permute.xlu0 1
        %1060 = vperm.xlu0 %1059, %v348
        %v1061 = vpop.permute.xlu0 %1060
        %1063 = vset.pattern.permute.xlu0 1
        %1064 = vperm.xlu0 %1063, %v349
        %v1065 = vpop.permute.xlu0 %1064
        %1067 = vset.pattern.permute.xlu0 1
        %1068 = vperm.xlu0 %1067, %v350
        %v1069 = vpop.permute.xlu0 %1068
        %1071 = vset.pattern.permute.xlu0 1
        %1072 = vperm.xlu0 %1071, %v351
        %v1073 = vpop.permute.xlu0 %1072
        %1075 = vset.pattern.permute.xlu0 1
        %1076 = vperm.xlu0 %1075, %v352
        %v1077 = vpop.permute.xlu0 %1076
        %1079 = vset.pattern.permute.xlu0 1
        %1080 = vperm.xlu0 %1079, %v353
        %v1081 = vpop.permute.xlu0 %1080
        %1083 = vset.pattern.permute.xlu0 1
        %1084 = vperm.xlu0 %1083, %v354
        %v1085 = vpop.permute.xlu0 %1084
        %1087 = vset.pattern.permute.xlu0 1
        %1088 = vperm.xlu0 %1087, %v355
        %v1089 = vpop.permute.xlu0 %1088
        %1091 = vset.pattern.permute.xlu0 1
        %1092 = vperm.xlu0 %1091, %v356
        %v1093 = vpop.permute.xlu0 %1092
        %1095 = vset.pattern.permute.xlu0 1
        %1096 = vperm.xlu0 %1095, %v357
        %v1097 = vpop.permute.xlu0 %1096
        %1099 = vset.pattern.permute.xlu0 1
        %1100 = vperm.xlu0 %1099, %v358
        %v1101 = vpop.permute.xlu0 %1100
        %1103 = vset.pattern.permute.xlu0 1
        %1104 = vperm.xlu0 %1103, %v359
        %v1105 = vpop.permute.xlu0 %1104
        %1107 = vset.pattern.permute.xlu0 1
        %1108 = vperm.xlu0 %1107, %v360
        %v1109 = vpop.permute.xlu0 %1108
        %1111 = vset.pattern.permute.xlu0 1
        %1112 = vperm.xlu0 %1111, %v361
        %v1113 = vpop.permute.xlu0 %1112
        %1115 = vset.pattern.permute.xlu0 1
        %1116 = vperm.xlu0 %1115, %v362
        %v1117 = vpop.permute.xlu0 %1116
        %1119 = vset.pattern.permute.xlu0 1
        %1120 = vperm.xlu0 %1119, %v363
        %v1121 = vpop.permute.xlu0 %1120
        %1123 = vset.pattern.permute.xlu0 1
        %1124 = vperm.xlu0 %1123, %v364
        %v1125 = vpop.permute.xlu0 %1124
        %1127 = vset.pattern.permute.xlu0 1
        %1128 = vperm.xlu0 %1127, %v365
        %v1129 = vpop.permute.xlu0 %1128
        %1131 = vset.pattern.permute.xlu0 1
        %1132 = vperm.xlu0 %1131, %v366
        %v1133 = vpop.permute.xlu0 %1132
        %v1135 = vmul.f32 %v815, %v881
        %v1136 = vmul.f32 %v816, %v885
        %v1137 = vmul.f32 %v817, %v889
        %v1138 = vmul.f32 %v818, %v893
        %v1139 = vmul.f32 %v819, %v897
        %v1140 = vmul.f32 %v820, %v901
        %v1141 = vmul.f32 %v821, %v905
        %v1142 = vmul.f32 %v822, %v909
        %v1143 = vmul.f32 %v823, %v913
        %v1144 = vmul.f32 %v824, %v917
        %v1145 = vmul.f32 %v825, %v921
        %v1146 = vmul.f32 %v826, %v925
        %v1147 = vmul.f32 %v827, %v929
        %v1148 = vmul.f32 %v828, %v933
        %v1149 = vmul.f32 %v829, %v937
        %v1150 = vmul.f32 %v830, %v941
        %v1151 = vmul.f32 %v831, %v945
        %v1152 = vmul.f32 %v832, %v949
        %v1153 = vmul.f32 %v833, %v953
        %v1154 = vmul.f32 %v834, %v957
        %v1155 = vmul.f32 %v835, %v961
        %v1156 = vmul.f32 %v836, %v965
        %v1157 = vmul.f32 %v837, %v969
        %v1158 = vmul.f32 %v838, %v973
        %v1159 = vmul.f32 %v839, %v977
        %v1160 = vmul.f32 %v840, %v981
        %v1161 = vmul.f32 %v841, %v985
        %v1162 = vmul.f32 %v842, %v989
        %v1163 = vmul.f32 %v843, %v993
        %v1164 = vmul.f32 %v844, %v997
        %v1165 = vmul.f32 %v845, %v1001
        %v1166 = vmul.f32 %v846, %v1005
        %v1167 = vmul.f32 %v847, %v1009
        %v1168 = vmul.f32 %v848, %v1013
        %v1169 = vmul.f32 %v849, %v1017
        %v1170 = vmul.f32 %v850, %v1021
        %v1171 = vmul.f32 %v851, %v1025
        %v1172 = vmul.f32 %v852, %v1029
        %v1173 = vmul.f32 %v853, %v1033
        %v1174 = vmul.f32 %v854, %v1037
        %v1175 = vmul.f32 %v855, %v1041
        %v1176 = vmul.f32 %v856, %v1045
        %v1177 = vmul.f32 %v857, %v1049
        %v1178 = vmul.f32 %v858, %v1053
        %v1179 = vmul.f32 %v859, %v1057
        %v1180 = vmul.f32 %v860, %v1061
        %v1181 = vmul.f32 %v861, %v1065
        %v1182 = vmul.f32 %v862, %v1069
        %v1183 = vmul.f32 %v863, %v1073
        %v1184 = vmul.f32 %v864, %v1077
        %v1185 = vmul.f32 %v865, %v1081
        %v1186 = vmul.f32 %v866, %v1085
        %v1187 = vmul.f32 %v867, %v1089
        %v1188 = vmul.f32 %v868, %v1093
        %v1189 = vmul.f32 %v869, %v1097
        %v1190 = vmul.f32 %v870, %v1101
        %v1191 = vmul.f32 %v871, %v1105
        %v1192 = vmul.f32 %v872, %v1109
        %v1193 = vmul.f32 %v873, %v1113
        %v1194 = vmul.f32 %v874, %v1117
        %v1195 = vmul.f32 %v875, %v1121
        %v1196 = vmul.f32 %v876, %v1125
        %v1197 = vmul.f32 %v877, %v1129
        %v1198 = vmul.f32 %v878, %v1133
        %v1199 = vadd.f32 %v751, %v1135
        %v1200 = vadd.f32 %v752, %v1136
        %v1201 = vadd.f32 %v753, %v1137
        %v1202 = vadd.f32 %v754, %v1138
        %v1203 = vadd.f32 %v755, %v1139
        %v1204 = vadd.f32 %v756, %v1140
        %v1205 = vadd.f32 %v757, %v1141
        %v1206 = vadd.f32 %v758, %v1142
        %v1207 = vadd.f32 %v759, %v1143
        %v1208 = vadd.f32 %v760, %v1144
        %v1209 = vadd.f32 %v761, %v1145
        %v1210 = vadd.f32 %v762, %v1146
        %v1211 = vadd.f32 %v763, %v1147
        %v1212 = vadd.f32 %v764, %v1148
        %v1213 = vadd.f32 %v765, %v1149
        %v1214 = vadd.f32 %v766, %v1150
        %v1215 = vadd.f32 %v767, %v1151
        %v1216 = vadd.f32 %v768, %v1152
        %v1217 = vadd.f32 %v769, %v1153
        %v1218 = vadd.f32 %v770, %v1154
        %v1219 = vadd.f32 %v771, %v1155
        %v1220 = vadd.f32 %v772, %v1156
        %v1221 = vadd.f32 %v773, %v1157
        %v1222 = vadd.f32 %v774, %v1158
        %v1223 = vadd.f32 %v775, %v1159
        %v1224 = vadd.f32 %v776, %v1160
        %v1225 = vadd.f32 %v777, %v1161
        %v1226 = vadd.f32 %v778, %v1162
        %v1227 = vadd.f32 %v779, %v1163
        %v1228 = vadd.f32 %v780, %v1164
        %v1229 = vadd.f32 %v781, %v1165
        %v1230 = vadd.f32 %v782, %v1166
        %v1231 = vadd.f32 %v783, %v1167
        %v1232 = vadd.f32 %v784, %v1168
        %v1233 = vadd.f32 %v785, %v1169
        %v1234 = vadd.f32 %v786, %v1170
        %v1235 = vadd.f32 %v787, %v1171
        %v1236 = vadd.f32 %v788, %v1172
        %v1237 = vadd.f32 %v789, %v1173
        %v1238 = vadd.f32 %v790, %v1174
        %v1239 = vadd.f32 %v791, %v1175
        %v1240 = vadd.f32 %v792, %v1176
        %v1241 = vadd.f32 %v793, %v1177
        %v1242 = vadd.f32 %v794, %v1178
        %v1243 = vadd.f32 %v795, %v1179
        %v1244 = vadd.f32 %v796, %v1180
        %v1245 = vadd.f32 %v797, %v1181
        %v1246 = vadd.f32 %v798, %v1182
        %v1247 = vadd.f32 %v799, %v1183
        %v1248 = vadd.f32 %v800, %v1184
        %v1249 = vadd.f32 %v801, %v1185
        %v1250 = vadd.f32 %v802, %v1186
        %v1251 = vadd.f32 %v803, %v1187
        %v1252 = vadd.f32 %v804, %v1188
        %v1253 = vadd.f32 %v805, %v1189
        %v1254 = vadd.f32 %v806, %v1190
        %v1255 = vadd.f32 %v807, %v1191
        %v1256 = vadd.f32 %v808, %v1192
        %v1257 = vadd.f32 %v809, %v1193
        %v1258 = vadd.f32 %v810, %v1194
        %v1259 = vadd.f32 %v811, %v1195
        %v1260 = vadd.f32 %v812, %v1196
        %v1261 = vadd.f32 %v813, %v1197
        %v1262 = vadd.f32 %v814, %v1198
        %v1263 = vld [vmem:[%s248] sm:$0xff]
        %v1264 = vld [vmem:[%s248 + $0x8] sm:$0xff]
        %v1265 = vld [vmem:[%s248 + $0x10] sm:$0xff]
        %v1266 = vld [vmem:[%s248 + $0x18] sm:$0xff]
        %v1267 = vld [vmem:[%s248 + $0x20] sm:$0xff]
        %v1268 = vld [vmem:[%s248 + $0x28] sm:$0xff]
        %v1269 = vld [vmem:[%s248 + $0x30] sm:$0xff]
        %v1270 = vld [vmem:[%s248 + $0x38] sm:$0xff]
        %v1271 = vld [vmem:[%s248 + $0x40] sm:$0xff]
        %v1272 = vld [vmem:[%s248 + $0x48] sm:$0xff]
        %v1273 = vld [vmem:[%s248 + $0x50] sm:$0xff]
        %v1274 = vld [vmem:[%s248 + $0x58] sm:$0xff]
        %v1275 = vld [vmem:[%s248 + $0x60] sm:$0xff]
        %v1276 = vld [vmem:[%s248 + $0x68] sm:$0xff]
        %v1277 = vld [vmem:[%s248 + $0x70] sm:$0xff]
        %v1278 = vld [vmem:[%s248 + $0x78] sm:$0xff]
        %v1279 = vld [vmem:[%s248 + $0x80] sm:$0xff]
        %v1280 = vld [vmem:[%s248 + $0x88] sm:$0xff]
        %v1281 = vld [vmem:[%s248 + $0x90] sm:$0xff]
        %v1282 = vld [vmem:[%s248 + $0x98] sm:$0xff]
        %v1283 = vld [vmem:[%s248 + $0xa0] sm:$0xff]
        %v1284 = vld [vmem:[%s248 + $0xa8] sm:$0xff]
        %v1285 = vld [vmem:[%s248 + $0xb0] sm:$0xff]
        %v1286 = vld [vmem:[%s248 + $0xb8] sm:$0xff]
        %v1287 = vld [vmem:[%s248 + $0xc0] sm:$0xff]
        %v1288 = vld [vmem:[%s248 + $0xc8] sm:$0xff]
        %v1289 = vld [vmem:[%s248 + $0xd0] sm:$0xff]
        %v1290 = vld [vmem:[%s248 + $0xd8] sm:$0xff]
        %v1291 = vld [vmem:[%s248 + $0xe0] sm:$0xff]
        %v1292 = vld [vmem:[%s248 + $0xe8] sm:$0xff]
        %v1293 = vld [vmem:[%s248 + $0xf0] sm:$0xff]
        %v1294 = vld [vmem:[%s248 + $0xf8] sm:$0xff]
        %v1295 = vld [vmem:[%s248 + $0x100] sm:$0xff]
        %v1296 = vld [vmem:[%s248 + $0x108] sm:$0xff]
        %v1297 = vld [vmem:[%s248 + $0x110] sm:$0xff]
        %v1298 = vld [vmem:[%s248 + $0x118] sm:$0xff]
        %v1299 = vld [vmem:[%s248 + $0x120] sm:$0xff]
        %v1300 = vld [vmem:[%s248 + $0x128] sm:$0xff]
        %v1301 = vld [vmem:[%s248 + $0x130] sm:$0xff]
        %v1302 = vld [vmem:[%s248 + $0x138] sm:$0xff]
        %v1303 = vld [vmem:[%s248 + $0x140] sm:$0xff]
        %v1304 = vld [vmem:[%s248 + $0x148] sm:$0xff]
        %v1305 = vld [vmem:[%s248 + $0x150] sm:$0xff]
        %v1306 = vld [vmem:[%s248 + $0x158] sm:$0xff]
        %v1307 = vld [vmem:[%s248 + $0x160] sm:$0xff]
        %v1308 = vld [vmem:[%s248 + $0x168] sm:$0xff]
        %v1309 = vld [vmem:[%s248 + $0x170] sm:$0xff]
        %v1310 = vld [vmem:[%s248 + $0x178] sm:$0xff]
        %v1311 = vld [vmem:[%s248 + $0x180] sm:$0xff]
        %v1312 = vld [vmem:[%s248 + $0x188] sm:$0xff]
        %v1313 = vld [vmem:[%s248 + $0x190] sm:$0xff]
        %v1314 = vld [vmem:[%s248 + $0x198] sm:$0xff]
        %v1315 = vld [vmem:[%s248 + $0x1a0] sm:$0xff]
        %v1316 = vld [vmem:[%s248 + $0x1a8] sm:$0xff]
        %v1317 = vld [vmem:[%s248 + $0x1b0] sm:$0xff]
        %v1318 = vld [vmem:[%s248 + $0x1b8] sm:$0xff]
        %v1319 = vld [vmem:[%s248 + $0x1c0] sm:$0xff]
        %v1320 = vld [vmem:[%s248 + $0x1c8] sm:$0xff]
        %v1321 = vld [vmem:[%s248 + $0x1d0] sm:$0xff]
        %v1322 = vld [vmem:[%s248 + $0x1d8] sm:$0xff]
        %v1323 = vld [vmem:[%s248 + $0x1e0] sm:$0xff]
        %v1324 = vld [vmem:[%s248 + $0x1e8] sm:$0xff]
        %v1325 = vld [vmem:[%s248 + $0x1f0] sm:$0xff]
        %v1326 = vld [vmem:[%s248 + $0x1f8] sm:$0xff]
        %1327 = vset.pattern.permute.xlu0 2
        %1328 = vperm.xlu0 %1327, %v303
        %v1329 = vpop.permute.xlu0 %1328
        %1331 = vset.pattern.permute.xlu0 2
        %1332 = vperm.xlu0 %1331, %v304
        %v1333 = vpop.permute.xlu0 %1332
        %1335 = vset.pattern.permute.xlu0 2
        %1336 = vperm.xlu0 %1335, %v305
        %v1337 = vpop.permute.xlu0 %1336
        %1339 = vset.pattern.permute.xlu0 2
        %1340 = vperm.xlu0 %1339, %v306
        %v1341 = vpop.permute.xlu0 %1340
        %1343 = vset.pattern.permute.xlu0 2
        %1344 = vperm.xlu0 %1343, %v307
        %v1345 = vpop.permute.xlu0 %1344
        %1347 = vset.pattern.permute.xlu0 2
        %1348 = vperm.xlu0 %1347, %v308
        %v1349 = vpop.permute.xlu0 %1348
        %1351 = vset.pattern.permute.xlu0 2
        %1352 = vperm.xlu0 %1351, %v309
        %v1353 = vpop.permute.xlu0 %1352
        %1355 = vset.pattern.permute.xlu0 2
        %1356 = vperm.xlu0 %1355, %v310
        %v1357 = vpop.permute.xlu0 %1356
        %1359 = vset.pattern.permute.xlu0 2
        %1360 = vperm.xlu0 %1359, %v311
        %v1361 = vpop.permute.xlu0 %1360
        %1363 = vset.pattern.permute.xlu0 2
        %1364 = vperm.xlu0 %1363, %v312
        %v1365 = vpop.permute.xlu0 %1364
        %1367 = vset.pattern.permute.xlu0 2
        %1368 = vperm.xlu0 %1367, %v313
        %v1369 = vpop.permute.xlu0 %1368
        %1371 = vset.pattern.permute.xlu0 2
        %1372 = vperm.xlu0 %1371, %v314
        %v1373 = vpop.permute.xlu0 %1372
        %1375 = vset.pattern.permute.xlu0 2
        %1376 = vperm.xlu0 %1375, %v315
        %v1377 = vpop.permute.xlu0 %1376
        %1379 = vset.pattern.permute.xlu0 2
        %1380 = vperm.xlu0 %1379, %v316
        %v1381 = vpop.permute.xlu0 %1380
        %1383 = vset.pattern.permute.xlu0 2
        %1384 = vperm.xlu0 %1383, %v317
        %v1385 = vpop.permute.xlu0 %1384
        %1387 = vset.pattern.permute.xlu0 2
        %1388 = vperm.xlu0 %1387, %v318
        %v1389 = vpop.permute.xlu0 %1388
        %1391 = vset.pattern.permute.xlu0 2
        %1392 = vperm.xlu0 %1391, %v319
        %v1393 = vpop.permute.xlu0 %1392
        %1395 = vset.pattern.permute.xlu0 2
        %1396 = vperm.xlu0 %1395, %v320
        %v1397 = vpop.permute.xlu0 %1396
        %1399 = vset.pattern.permute.xlu0 2
        %1400 = vperm.xlu0 %1399, %v321
        %v1401 = vpop.permute.xlu0 %1400
        %1403 = vset.pattern.permute.xlu0 2
        %1404 = vperm.xlu0 %1403, %v322
        %v1405 = vpop.permute.xlu0 %1404
        %1407 = vset.pattern.permute.xlu0 2
        %1408 = vperm.xlu0 %1407, %v323
        %v1409 = vpop.permute.xlu0 %1408
        %1411 = vset.pattern.permute.xlu0 2
        %1412 = vperm.xlu0 %1411, %v324
        %v1413 = vpop.permute.xlu0 %1412
        %1415 = vset.pattern.permute.xlu0 2
        %1416 = vperm.xlu0 %1415, %v325
        %v1417 = vpop.permute.xlu0 %1416
        %1419 = vset.pattern.permute.xlu0 2
        %1420 = vperm.xlu0 %1419, %v326
        %v1421 = vpop.permute.xlu0 %1420
        %1423 = vset.pattern.permute.xlu0 2
        %1424 = vperm.xlu0 %1423, %v327
        %v1425 = vpop.permute.xlu0 %1424
        %1427 = vset.pattern.permute.xlu0 2
        %1428 = vperm.xlu0 %1427, %v328
        %v1429 = vpop.permute.xlu0 %1428
        %1431 = vset.pattern.permute.xlu0 2
        %1432 = vperm.xlu0 %1431, %v329
        %v1433 = vpop.permute.xlu0 %1432
        %1435 = vset.pattern.permute.xlu0 2
        %1436 = vperm.xlu0 %1435, %v330
        %v1437 = vpop.permute.xlu0 %1436
        %1439 = vset.pattern.permute.xlu0 2
        %1440 = vperm.xlu0 %1439, %v331
        %v1441 = vpop.permute.xlu0 %1440
        %1443 = vset.pattern.permute.xlu0 2
        %1444 = vperm.xlu0 %1443, %v332
        %v1445 = vpop.permute.xlu0 %1444
        %1447 = vset.pattern.permute.xlu0 2
        %1448 = vperm.xlu0 %1447, %v333
        %v1449 = vpop.permute.xlu0 %1448
        %1451 = vset.pattern.permute.xlu0 2
        %1452 = vperm.xlu0 %1451, %v334
        %v1453 = vpop.permute.xlu0 %1452
        %1455 = vset.pattern.permute.xlu0 2
        %1456 = vperm.xlu0 %1455, %v335
        %v1457 = vpop.permute.xlu0 %1456
        %1459 = vset.pattern.permute.xlu0 2
        %1460 = vperm.xlu0 %1459, %v336
        %v1461 = vpop.permute.xlu0 %1460
        %1463 = vset.pattern.permute.xlu0 2
        %1464 = vperm.xlu0 %1463, %v337
        %v1465 = vpop.permute.xlu0 %1464
        %1467 = vset.pattern.permute.xlu0 2
        %1468 = vperm.xlu0 %1467, %v338
        %v1469 = vpop.permute.xlu0 %1468
        %1471 = vset.pattern.permute.xlu0 2
        %1472 = vperm.xlu0 %1471, %v339
        %v1473 = vpop.permute.xlu0 %1472
        %1475 = vset.pattern.permute.xlu0 2
        %1476 = vperm.xlu0 %1475, %v340
        %v1477 = vpop.permute.xlu0 %1476
        %1479 = vset.pattern.permute.xlu0 2
        %1480 = vperm.xlu0 %1479, %v341
        %v1481 = vpop.permute.xlu0 %1480
        %1483 = vset.pattern.permute.xlu0 2
        %1484 = vperm.xlu0 %1483, %v342
        %v1485 = vpop.permute.xlu0 %1484
        %1487 = vset.pattern.permute.xlu0 2
        %1488 = vperm.xlu0 %1487, %v343
        %v1489 = vpop.permute.xlu0 %1488
        %1491 = vset.pattern.permute.xlu0 2
        %1492 = vperm.xlu0 %1491, %v344
        %v1493 = vpop.permute.xlu0 %1492
        %1495 = vset.pattern.permute.xlu0 2
        %1496 = vperm.xlu0 %1495, %v345
        %v1497 = vpop.permute.xlu0 %1496
        %1499 = vset.pattern.permute.xlu0 2
        %1500 = vperm.xlu0 %1499, %v346
        %v1501 = vpop.permute.xlu0 %1500
        %1503 = vset.pattern.permute.xlu0 2
        %1504 = vperm.xlu0 %1503, %v347
        %v1505 = vpop.permute.xlu0 %1504
        %1507 = vset.pattern.permute.xlu0 2
        %1508 = vperm.xlu0 %1507, %v348
        %v1509 = vpop.permute.xlu0 %1508
        %1511 = vset.pattern.permute.xlu0 2
        %1512 = vperm.xlu0 %1511, %v349
        %v1513 = vpop.permute.xlu0 %1512
        %1515 = vset.pattern.permute.xlu0 2
        %1516 = vperm.xlu0 %1515, %v350
        %v1517 = vpop.permute.xlu0 %1516
        %1519 = vset.pattern.permute.xlu0 2
        %1520 = vperm.xlu0 %1519, %v351
        %v1521 = vpop.permute.xlu0 %1520
        %1523 = vset.pattern.permute.xlu0 2
        %1524 = vperm.xlu0 %1523, %v352
        %v1525 = vpop.permute.xlu0 %1524
        %1527 = vset.pattern.permute.xlu0 2
        %1528 = vperm.xlu0 %1527, %v353
        %v1529 = vpop.permute.xlu0 %1528
        %1531 = vset.pattern.permute.xlu0 2
        %1532 = vperm.xlu0 %1531, %v354
        %v1533 = vpop.permute.xlu0 %1532
        %1535 = vset.pattern.permute.xlu0 2
        %1536 = vperm.xlu0 %1535, %v355
        %v1537 = vpop.permute.xlu0 %1536
        %1539 = vset.pattern.permute.xlu0 2
        %1540 = vperm.xlu0 %1539, %v356
        %v1541 = vpop.permute.xlu0 %1540
        %1543 = vset.pattern.permute.xlu0 2
        %1544 = vperm.xlu0 %1543, %v357
        %v1545 = vpop.permute.xlu0 %1544
        %1547 = vset.pattern.permute.xlu0 2
        %1548 = vperm.xlu0 %1547, %v358
        %v1549 = vpop.permute.xlu0 %1548
        %1551 = vset.pattern.permute.xlu0 2
        %1552 = vperm.xlu0 %1551, %v359
        %v1553 = vpop.permute.xlu0 %1552
        %1555 = vset.pattern.permute.xlu0 2
        %1556 = vperm.xlu0 %1555, %v360
        %v1557 = vpop.permute.xlu0 %1556
        %1559 = vset.pattern.permute.xlu0 2
        %1560 = vperm.xlu0 %1559, %v361
        %v1561 = vpop.permute.xlu0 %1560
        %1563 = vset.pattern.permute.xlu0 2
        %1564 = vperm.xlu0 %1563, %v362
        %v1565 = vpop.permute.xlu0 %1564
        %1567 = vset.pattern.permute.xlu0 2
        %1568 = vperm.xlu0 %1567, %v363
        %v1569 = vpop.permute.xlu0 %1568
        %1571 = vset.pattern.permute.xlu0 2
        %1572 = vperm.xlu0 %1571, %v364
        %v1573 = vpop.permute.xlu0 %1572
        %1575 = vset.pattern.permute.xlu0 2
        %1576 = vperm.xlu0 %1575, %v365
        %v1577 = vpop.permute.xlu0 %1576
        %1579 = vset.pattern.permute.xlu0 2
        %1580 = vperm.xlu0 %1579, %v366
        %v1581 = vpop.permute.xlu0 %1580
        %v1583 = vmul.f32 %v1263, %v1329
        %v1584 = vmul.f32 %v1264, %v1333
        %v1585 = vmul.f32 %v1265, %v1337
        %v1586 = vmul.f32 %v1266, %v1341
        %v1587 = vmul.f32 %v1267, %v1345
        %v1588 = vmul.f32 %v1268, %v1349
        %v1589 = vmul.f32 %v1269, %v1353
        %v1590 = vmul.f32 %v1270, %v1357
        %v1591 = vmul.f32 %v1271, %v1361
        %v1592 = vmul.f32 %v1272, %v1365
        %v1593 = vmul.f32 %v1273, %v1369
        %v1594 = vmul.f32 %v1274, %v1373
        %v1595 = vmul.f32 %v1275, %v1377
        %v1596 = vmul.f32 %v1276, %v1381
        %v1597 = vmul.f32 %v1277, %v1385
        %v1598 = vmul.f32 %v1278, %v1389
        %v1599 = vmul.f32 %v1279, %v1393
        %v1600 = vmul.f32 %v1280, %v1397
        %v1601 = vmul.f32 %v1281, %v1401
        %v1602 = vmul.f32 %v1282, %v1405
        %v1603 = vmul.f32 %v1283, %v1409
        %v1604 = vmul.f32 %v1284, %v1413
        %v1605 = vmul.f32 %v1285, %v1417
        %v1606 = vmul.f32 %v1286, %v1421
        %v1607 = vmul.f32 %v1287, %v1425
        %v1608 = vmul.f32 %v1288, %v1429
        %v1609 = vmul.f32 %v1289, %v1433
        %v1610 = vmul.f32 %v1290, %v1437
        %v1611 = vmul.f32 %v1291, %v1441
        %v1612 = vmul.f32 %v1292, %v1445
        %v1613 = vmul.f32 %v1293, %v1449
        %v1614 = vmul.f32 %v1294, %v1453
        %v1615 = vmul.f32 %v1295, %v1457
        %v1616 = vmul.f32 %v1296, %v1461
        %v1617 = vmul.f32 %v1297, %v1465
        %v1618 = vmul.f32 %v1298, %v1469
        %v1619 = vmul.f32 %v1299, %v1473
        %v1620 = vmul.f32 %v1300, %v1477
        %v1621 = vmul.f32 %v1301, %v1481
        %v1622 = vmul.f32 %v1302, %v1485
        %v1623 = vmul.f32 %v1303, %v1489
        %v1624 = vmul.f32 %v1304, %v1493
        %v1625 = vmul.f32 %v1305, %v1497
        %v1626 = vmul.f32 %v1306, %v1501
        %v1627 = vmul.f32 %v1307, %v1505
        %v1628 = vmul.f32 %v1308, %v1509
        %v1629 = vmul.f32 %v1309, %v1513
        %v1630 = vmul.f32 %v1310, %v1517
        %v1631 = vmul.f32 %v1311, %v1521
        %v1632 = vmul.f32 %v1312, %v1525
        %v1633 = vmul.f32 %v1313, %v1529
        %v1634 = vmul.f32 %v1314, %v1533
        %v1635 = vmul.f32 %v1315, %v1537
        %v1636 = vmul.f32 %v1316, %v1541
        %v1637 = vmul.f32 %v1317, %v1545
        %v1638 = vmul.f32 %v1318, %v1549
        %v1639 = vmul.f32 %v1319, %v1553
        %v1640 = vmul.f32 %v1320, %v1557
        %v1641 = vmul.f32 %v1321, %v1561
        %v1642 = vmul.f32 %v1322, %v1565
        %v1643 = vmul.f32 %v1323, %v1569
        %v1644 = vmul.f32 %v1324, %v1573
        %v1645 = vmul.f32 %v1325, %v1577
        %v1646 = vmul.f32 %v1326, %v1581
        %v1647 = vadd.f32 %v1199, %v1583
        %v1648 = vadd.f32 %v1200, %v1584
        %v1649 = vadd.f32 %v1201, %v1585
        %v1650 = vadd.f32 %v1202, %v1586
        %v1651 = vadd.f32 %v1203, %v1587
        %v1652 = vadd.f32 %v1204, %v1588
        %v1653 = vadd.f32 %v1205, %v1589
        %v1654 = vadd.f32 %v1206, %v1590
        %v1655 = vadd.f32 %v1207, %v1591
        %v1656 = vadd.f32 %v1208, %v1592
        %v1657 = vadd.f32 %v1209, %v1593
        %v1658 = vadd.f32 %v1210, %v1594
        %v1659 = vadd.f32 %v1211, %v1595
        %v1660 = vadd.f32 %v1212, %v1596
        %v1661 = vadd.f32 %v1213, %v1597
        %v1662 = vadd.f32 %v1214, %v1598
        %v1663 = vadd.f32 %v1215, %v1599
        %v1664 = vadd.f32 %v1216, %v1600
        %v1665 = vadd.f32 %v1217, %v1601
        %v1666 = vadd.f32 %v1218, %v1602
        %v1667 = vadd.f32 %v1219, %v1603
        %v1668 = vadd.f32 %v1220, %v1604
        %v1669 = vadd.f32 %v1221, %v1605
        %v1670 = vadd.f32 %v1222, %v1606
        %v1671 = vadd.f32 %v1223, %v1607
        %v1672 = vadd.f32 %v1224, %v1608
        %v1673 = vadd.f32 %v1225, %v1609
        %v1674 = vadd.f32 %v1226, %v1610
        %v1675 = vadd.f32 %v1227, %v1611
        %v1676 = vadd.f32 %v1228, %v1612
        %v1677 = vadd.f32 %v1229, %v1613
        %v1678 = vadd.f32 %v1230, %v1614
        %v1679 = vadd.f32 %v1231, %v1615
        %v1680 = vadd.f32 %v1232, %v1616
        %v1681 = vadd.f32 %v1233, %v1617
        %v1682 = vadd.f32 %v1234, %v1618
        %v1683 = vadd.f32 %v1235, %v1619
        %v1684 = vadd.f32 %v1236, %v1620
        %v1685 = vadd.f32 %v1237, %v1621
        %v1686 = vadd.f32 %v1238, %v1622
        %v1687 = vadd.f32 %v1239, %v1623
        %v1688 = vadd.f32 %v1240, %v1624
        %v1689 = vadd.f32 %v1241, %v1625
        %v1690 = vadd.f32 %v1242, %v1626
        %v1691 = vadd.f32 %v1243, %v1627
        %v1692 = vadd.f32 %v1244, %v1628
        %v1693 = vadd.f32 %v1245, %v1629
        %v1694 = vadd.f32 %v1246, %v1630
        %v1695 = vadd.f32 %v1247, %v1631
        %v1696 = vadd.f32 %v1248, %v1632
        %v1697 = vadd.f32 %v1249, %v1633
        %v1698 = vadd.f32 %v1250, %v1634
        %v1699 = vadd.f32 %v1251, %v1635
        %v1700 = vadd.f32 %v1252, %v1636
        %v1701 = vadd.f32 %v1253, %v1637
        %v1702 = vadd.f32 %v1254, %v1638
        %v1703 = vadd.f32 %v1255, %v1639
        %v1704 = vadd.f32 %v1256, %v1640
        %v1705 = vadd.f32 %v1257, %v1641
        %v1706 = vadd.f32 %v1258, %v1642
        %v1707 = vadd.f32 %v1259, %v1643
        %v1708 = vadd.f32 %v1260, %v1644
        %v1709 = vadd.f32 %v1261, %v1645
        %v1710 = vadd.f32 %v1262, %v1646
        %1711 = vst [vmem:[%s287] sm:$0xff] %v1647
        %1712 = vst [vmem:[%s287 + $0x8] sm:$0xff] %v1648
        %1713 = vst [vmem:[%s287 + $0x10] sm:$0xff] %v1649
        %1714 = vst [vmem:[%s287 + $0x18] sm:$0xff] %v1650
        %1715 = vst [vmem:[%s287 + $0x20] sm:$0xff] %v1651
        %1716 = vst [vmem:[%s287 + $0x28] sm:$0xff] %v1652
        %1717 = vst [vmem:[%s287 + $0x30] sm:$0xff] %v1653
        %1718 = vst [vmem:[%s287 + $0x38] sm:$0xff] %v1654
        %1719 = vst [vmem:[%s287 + $0x40] sm:$0xff] %v1655
        %1720 = vst [vmem:[%s287 + $0x48] sm:$0xff] %v1656
        %1721 = vst [vmem:[%s287 + $0x50] sm:$0xff] %v1657
        %1722 = vst [vmem:[%s287 + $0x58] sm:$0xff] %v1658
        %1723 = vst [vmem:[%s287 + $0x60] sm:$0xff] %v1659
        %1724 = vst [vmem:[%s287 + $0x68] sm:$0xff] %v1660
        %1725 = vst [vmem:[%s287 + $0x70] sm:$0xff] %v1661
        %1726 = vst [vmem:[%s287 + $0x78] sm:$0xff] %v1662
        %1727 = vst [vmem:[%s287 + $0x80] sm:$0xff] %v1663
        %1728 = vst [vmem:[%s287 + $0x88] sm:$0xff] %v1664
        %1729 = vst [vmem:[%s287 + $0x90] sm:$0xff] %v1665
        %1730 = vst [vmem:[%s287 + $0x98] sm:$0xff] %v1666
        %1731 = vst [vmem:[%s287 + $0xa0] sm:$0xff] %v1667
        %1732 = vst [vmem:[%s287 + $0xa8] sm:$0xff] %v1668
        %1733 = vst [vmem:[%s287 + $0xb0] sm:$0xff] %v1669
        %1734 = vst [vmem:[%s287 + $0xb8] sm:$0xff] %v1670
        %1735 = vst [vmem:[%s287 + $0xc0] sm:$0xff] %v1671
        %1736 = vst [vmem:[%s287 + $0xc8] sm:$0xff] %v1672
        %1737 = vst [vmem:[%s287 + $0xd0] sm:$0xff] %v1673
        %1738 = vst [vmem:[%s287 + $0xd8] sm:$0xff] %v1674
        %1739 = vst [vmem:[%s287 + $0xe0] sm:$0xff] %v1675
        %1740 = vst [vmem:[%s287 + $0xe8] sm:$0xff] %v1676
        %1741 = vst [vmem:[%s287 + $0xf0] sm:$0xff] %v1677
        %1742 = vst [vmem:[%s287 + $0xf8] sm:$0xff] %v1678
        %1743 = vst [vmem:[%s287 + $0x100] sm:$0xff] %v1679
        %1744 = vst [vmem:[%s287 + $0x108] sm:$0xff] %v1680
        %1745 = vst [vmem:[%s287 + $0x110] sm:$0xff] %v1681
        %1746 = vst [vmem:[%s287 + $0x118] sm:$0xff] %v1682
        %1747 = vst [vmem:[%s287 + $0x120] sm:$0xff] %v1683
        %1748 = vst [vmem:[%s287 + $0x128] sm:$0xff] %v1684
        %1749 = vst [vmem:[%s287 + $0x130] sm:$0xff] %v1685
        %1750 = vst [vmem:[%s287 + $0x138] sm:$0xff] %v1686
        %1751 = vst [vmem:[%s287 + $0x140] sm:$0xff] %v1687
        %1752 = vst [vmem:[%s287 + $0x148] sm:$0xff] %v1688
        %1753 = vst [vmem:[%s287 + $0x150] sm:$0xff] %v1689
        %1754 = vst [vmem:[%s287 + $0x158] sm:$0xff] %v1690
        %1755 = vst [vmem:[%s287 + $0x160] sm:$0xff] %v1691
        %1756 = vst [vmem:[%s287 + $0x168] sm:$0xff] %v1692
        %1757 = vst [vmem:[%s287 + $0x170] sm:$0xff] %v1693
        %1758 = vst [vmem:[%s287 + $0x178] sm:$0xff] %v1694
        %1759 = vst [vmem:[%s287 + $0x180] sm:$0xff] %v1695
        %1760 = vst [vmem:[%s287 + $0x188] sm:$0xff] %v1696
        %1761 = vst [vmem:[%s287 + $0x190] sm:$0xff] %v1697
        %1762 = vst [vmem:[%s287 + $0x198] sm:$0xff] %v1698
        %1763 = vst [vmem:[%s287 + $0x1a0] sm:$0xff] %v1699
        %1764 = vst [vmem:[%s287 + $0x1a8] sm:$0xff] %v1700
        %1765 = vst [vmem:[%s287 + $0x1b0] sm:$0xff] %v1701
        %1766 = vst [vmem:[%s287 + $0x1b8] sm:$0xff] %v1702
        %1767 = vst [vmem:[%s287 + $0x1c0] sm:$0xff] %v1703
        %1768 = vst [vmem:[%s287 + $0x1c8] sm:$0xff] %v1704
        %1769 = vst [vmem:[%s287 + $0x1d0] sm:$0xff] %v1705
        %1770 = vst [vmem:[%s287 + $0x1d8] sm:$0xff] %v1706
        %1771 = vst [vmem:[%s287 + $0x1e0] sm:$0xff] %v1707
        %1772 = vst [vmem:[%s287 + $0x1e8] sm:$0xff] %v1708
        %1773 = vst [vmem:[%s287 + $0x1f0] sm:$0xff] %v1709
        %1774 = vst [vmem:[%s287 + $0x1f8] sm:$0xff] %v1710
        %s1775 = sand.u32 %s136, 1
        %s1776 = scalar_lea.sflag [#allocation4], %s1775
        %s1777 = sand.u32 %s136, 1
        %s1778 = smul.addr %s1777, 512
        %s1779 = scalar_lea.vmem [#allocation7], %s1778
        // Predicated region
        $region45: #{tpu_custom_call.1} parent=35 // pred_check
          %p1780 = pneg %p146
        $region46: #{tpu_custom_call.1} parent=35 // pred_check_branch
          %1782 = sbr.rel (%p1780) target = $region48
        $region47: #{tpu_custom_call.1} parent=35 // pred_region
          %s1783 = smul.u32 64, %s24
          %s1785 = ssub.s32 8192, 8192
          %1786 = vsyncadd %s1776, %s1785
          %s1787 = smul.addr %s1783, 128
          %s1788 = scalar_lea.hbm %s4, %s1787
          %s1789 = sshll.u32 %s1779, 4
          %s1790 = int_to_ptr.vmem [resolvable:$true] %s1789
          %1795 = dma.vmem_to_hbm [thread:$0]  %s1790, 8192, %s1788, %s1776, 128, 128, 8
        $region48: #{tpu_custom_call.1} parent=35 // pred_fallthru
          _
      $region36: #{tpu_custom_call.1} parent=5 // pred_fallthru
        _
      %p1796 = scmp.le.s32.totalorder 2, %s19
      // Predicated region
      $region49: #{tpu_custom_call.1} parent=5 // pred_check
        %p1797 = pneg %p1796
      $region50: #{tpu_custom_call.1} parent=5 // pred_check_branch
        %1799 = sbr.rel (%p1797) target = $region52
      $region51: #{tpu_custom_call.1} parent=5 // pred_region
        %s1800 = ssub.s32 %s19, 2
        // Predicated region
        $region53: #{tpu_custom_call.1} parent=51 // pred_check
          %p1801 = pneg %p152
        $region54: #{tpu_custom_call.1} parent=51 // pred_check_branch
          %1803 = sbr.rel (%p1801) target = $region56
        $region55: #{tpu_custom_call.1} parent=51 // pred_region
          %s1804 = sand.u32 %s137, 1
          %s1805 = scalar_lea.sflag [#allocation4], %s1804
          %s1806 = sand.u32 %s137, 1
          %s1807 = smul.addr %s1806, 512
          %s1808 = scalar_lea.vmem [#allocation7], %s1807
          %1809 = dma.done %s1805, 8192
        $region56: #{tpu_custom_call.1} parent=51 // pred_fallthru
          _
      $region52: #{tpu_custom_call.1} parent=5 // pred_fallthru
        _
    $region6: #{tpu_custom_call.1} parent=1 // loop_footer
      %s23 = sadd.s32 1, %s19
    $region7: #{tpu_custom_call.1} parent=1 // loop_footer_branch
      %18 = sbr.rel target = $region3
    $region8: #{tpu_custom_call.1} parent=1 // loop_exit
      _
    %1810 = vsyncpa [#allocation3], 1
    %s1811 = scalar_lea.sflag [#allocation3], 1
    %1812 = vsyncpa %s1811, 1
    %1813 = vsyncpa [#allocation6], 1
    %s1814 = scalar_lea.sflag [#allocation6], 1
    %1815 = vsyncpa %s1814, 1
    %1816 = vsyncpa [#allocation4], 1
    %s1817 = scalar_lea.sflag [#allocation4], 1
    %1818 = vsyncpa %s1817, 1

</llo_original>
